<compile_context>
chip_gen: v6e
topology: v6e:2x2x1
jax: 0.10.0
libtpu: 0.0.40
codegen_flags: <defaults>
</compile_context>

<pallas_src>
import jax
import jax.numpy as jnp
from jax.experimental import pallas as pl
from jax.experimental.pallas import tpu as pltpu

# Logical sizes (PyTorch model) and lane-padded kernel sizes.
D_IN = 28 * 28        # 784
H1, H2, OUT_DIM = 200, 100, 10
H1_PAD, H2_PAD = 256, 128     # hidden dims padded to lane multiples


def _round_up(n, m):
    return ((n + m - 1) // m) * m


def mlp_kernel(x_ref, w1_ref, b1_ref, w2_ref, b2_ref, w3_ref, b3_ref, o_ref):
    # x_ref: (TB, 784) fp32; weights bf16 (padded); biases fp32 (padded).
    # Cast x to bf16 in-kernel (free on the VPU, hidden under the input DMA).
    x = x_ref[...].astype(jnp.bfloat16)

    # Layer 1: (TB, 784) @ (784, 256) -> fp32 acc, bias + ReLU in fp32.
    h1 = jnp.dot(x, w1_ref[...], preferred_element_type=jnp.float32)
    h1 = jnp.maximum(h1 + b1_ref[...], 0.0)

    # Layer 2: (TB, 256) @ (256, 128); padded columns/rows are zeros -> no effect.
    h2 = jnp.dot(h1.astype(jnp.bfloat16), w2_ref[...],
                 preferred_element_type=jnp.float32)
    h2 = jnp.maximum(h2 + b2_ref[...], 0.0)

    # Layer 3: (TB, 128) @ (128, 10) -> compact (TB, 10) logits, fp32 store.
    out = jnp.dot(h2.astype(jnp.bfloat16), w3_ref[...],
                  preferred_element_type=jnp.float32)
    o_ref[...] = (out + b3_ref[...]).astype(o_ref.dtype)


def fc_user_model_forward(x, packed_params, *, tb=2048):
    """x: (B, 1, 28, 28) float32 (NCHW). Returns (B, 10) float32 logits."""
    w1, b1, w2, b2, w3, b3 = packed_params
    B = x.shape[0]
    # nn.Flatten(): a free reshape; NO dtype cast here (done inside the kernel).
    x2d = x.reshape(B, D_IN)

    # Batch tile: multiple of 128, big enough to amortize the ~0.35us per-step
    # overhead, capped at tb (default 2048, sized for v7x's 64 MiB/TC VMEM).
    TB = min(tb, _round_up(B, 128))
    grid = (pl.cdiv(B, TB),)

    # Cost estimate for the final data path (advisory for XLA's scheduler).
    flops = 2 * B * (D_IN * H1_PAD + H1_PAD * H2_PAD + H2_PAD * OUT_DIM)
    bytes_accessed = (
        B * D_IN * 4                                                    # x fp32
        + (D_IN * H1_PAD + H1_PAD * H2_PAD + H2_PAD * OUT_DIM) * 2      # W bf16
        + (H1_PAD + H2_PAD + OUT_DIM) * 4                               # biases
        + B * OUT_DIM * 4                                               # logits
    )
    cost = pl.CostEstimate(flops=flops, transcendentals=0,
                           bytes_accessed=bytes_accessed)

    # Rough VMEM footprint: double-buffered fp32 x tiles + resident weights +
    # fp32/bf16 intermediates + double-buffered (lane-padded) out tile.
    est_vmem = (
        2 * TB * D_IN * 4
        + 2 * 2 * (D_IN * H1_PAD + H1_PAD * H2_PAD + H2_PAD * OUT_DIM)
        + TB * (H1_PAD + H2_PAD) * 6
        + 2 * TB * 128 * 4
    )
    # Raise past v5e's 16 MiB default scoped limit; stay under v7x's 64 MiB/TC.
    vmem_limit = max(32 << 20, min(est_vmem + (8 << 20), 60 << 20))

    out = pl.pallas_call(
        mlp_kernel,
        out_shape=jax.ShapeDtypeStruct((B, OUT_DIM), jnp.float32),
        grid=grid,
        in_specs=[
            pl.BlockSpec((TB, D_IN), lambda i: (i, 0)),          # x tile streams
            pl.BlockSpec((D_IN, H1_PAD), lambda i: (0, 0)),      # weights pinned
            pl.BlockSpec((1, H1_PAD), lambda i: (0, 0)),
            pl.BlockSpec((H1_PAD, H2_PAD), lambda i: (0, 0)),
            pl.BlockSpec((1, H2_PAD), lambda i: (0, 0)),
            pl.BlockSpec((H2_PAD, OUT_DIM), lambda i: (0, 0)),
            pl.BlockSpec((1, OUT_DIM), lambda i: (0, 0)),
        ],
        out_specs=pl.BlockSpec((TB, OUT_DIM), lambda i: (i, 0)),  # compact (B,10)
        compiler_params=pltpu.CompilerParams(
            dimension_semantics=("parallel",),
            vmem_limit_bytes=vmem_limit),
        cost_estimate=cost,
    )(x2d, w1, b1, w2, b2, w3, b3)

    return out


def init_params(key):
    """Deterministic init mimicking nn.Linear's U(-1/sqrt(fan_in), 1/sqrt(fan_in)).

    Returns logical fp32 params, stored (in_features, out_features) so the
    kernel computes y = x @ W + b (identical to PyTorch's x @ W.T + b).
    """
    dims = [(D_IN, H1), (H1, H2), (H2, OUT_DIM)]
    params = []
    for i, (fan_in, fan_out) in enumerate(dims):
        kw, kb = jax.random.split(jax.random.fold_in(key, i))
        bound = 1.0 / (fan_in ** 0.5)
        w = jax.random.uniform(kw, (fan_in, fan_out), jnp.float32, -bound, bound)
        b = jax.random.uniform(kb, (1, fan_out), jnp.float32, -bound, bound)
        params += [w, b]
    return tuple(params)


def pack_params(params):
    """Pad contraction/hidden dims to lane multiples; cast weights to bf16 (once).

    Zero pads propagate exact zeros through bias-add/ReLU and the next matmul,
    so padded dims never perturb the logits.  Output columns stay at 10.
    """
    w1, b1, w2, b2, w3, b3 = params

    def pad_w(w, rows, cols):
        buf = jnp.zeros((rows, cols), jnp.float32)
        buf = buf.at[: w.shape[0], : w.shape[1]].set(w)
        return buf.astype(jnp.bfloat16)

    def pad_b(b, cols):
        buf = jnp.zeros((1, cols), jnp.float32)
        return buf.at[:, : b.shape[1]].set(b)

    return (
        pad_w(w1, D_IN, H1_PAD), pad_b(b1, H1_PAD),
        pad_w(w2, H1_PAD, H2_PAD), pad_b(b2, H2_PAD),
        pad_w(w3, H2_PAD, OUT_DIM), b3.astype(jnp.float32),
    )


if __name__ == "__main__":
    key = jax.random.PRNGKey(0)
    kx, kp = jax.random.split(key)

    B = 4
    x = jax.random.normal(kx, (B, 1, 28, 28), jnp.float32)  # MNIST-like NCHW input
    params = init_params(kp)
    packed = pack_params(params)

    out = fc_user_model_forward(x, packed)
    out = jax.block_until_ready(out)

    # Pure-JAX reference of the same math (bf16 operands, fp32 accumulation),
    # mirroring the kernel's precision so the comparison is tight.
    w1, b1, w2, b2, w3, b3 = params

    def bf(a):
        return a.astype(jnp.bfloat16).astype(jnp.float32)

    x2d = x.reshape(B, -1)
    h = jnp.maximum(bf(x2d) @ bf(w1) + b1, 0.0)
    h = jnp.maximum(bf(h) @ bf(w2) + b2, 0.0)
    ref = bf(h) @ bf(w3) + b3

    assert out.shape == (B, OUT_DIM)
    assert jnp.allclose(out, ref, atol=1e-2, rtol=1e-2), (
        jnp.max(jnp.abs(out - ref)))

    print("KERNEL_OK")
</pallas_src>

<mosaic_0001>
module attributes {stable_mosaic.version = 11 : i64} {
  func.func @mlp_kernel(%arg0: i32, %arg1: memref<128x784xf32, #tpu.memory_space<vmem>>, %arg2: memref<784x256xbf16, #tpu.memory_space<vmem>>, %arg3: memref<1x256xf32, #tpu.memory_space<vmem>>, %arg4: memref<256x128xbf16, #tpu.memory_space<vmem>>, %arg5: memref<1x128xf32, #tpu.memory_space<vmem>>, %arg6: memref<128x10xbf16, #tpu.memory_space<vmem>>, %arg7: memref<1x10xf32, #tpu.memory_space<vmem>>, %arg8: memref<128x10xf32, #tpu.memory_space<vmem>>) attributes {dimension_semantics = [#tpu.dimension_semantics<parallel>], iteration_bounds = array<i64: 1>, scalar_prefetch = 0 : i64, scratch_operands = 0 : i64, tpu.core_type = #tpu.core_type<tc>, window_params = [{transform_indices = @transform_0, window_bounds = array<i64: 128, 784>}, {pipeline_mode = #tpu.pipeline_mode<synchronous>, transform_indices = @transform_1, window_bounds = array<i64: 784, 256>}, {pipeline_mode = #tpu.pipeline_mode<synchronous>, transform_indices = @transform_2, window_bounds = array<i64: 1, 256>}, {pipeline_mode = #tpu.pipeline_mode<synchronous>, transform_indices = @transform_3, window_bounds = array<i64: 256, 128>}, {pipeline_mode = #tpu.pipeline_mode<synchronous>, transform_indices = @transform_4, window_bounds = array<i64: 1, 128>}, {pipeline_mode = #tpu.pipeline_mode<synchronous>, transform_indices = @transform_5, window_bounds = array<i64: 128, 10>}, {pipeline_mode = #tpu.pipeline_mode<synchronous>, transform_indices = @transform_6, window_bounds = array<i64: 1, 10>}, {transform_indices = @transform_7, window_bounds = array<i64: 128, 10>}]} {
    %c0 = arith.constant 0 : index
    %c0_0 = arith.constant 0 : index
    %0 = vector.load %arg1[%c0, %c0_0] : memref<128x784xf32, #tpu.memory_space<vmem>>, vector<128x784xf32>
    %1 = arith.truncf %0 : vector<128x784xf32> to vector<128x784xbf16>
    %c0_1 = arith.constant 0 : index
    %c0_2 = arith.constant 0 : index
    %2 = vector.load %arg2[%c0_1, %c0_2] : memref<784x256xbf16, #tpu.memory_space<vmem>>, vector<784x256xbf16>
    %cst = arith.constant dense<0.000000e+00> : vector<128x256xf32>
    %3 = tpu.matmul %1, %2, %cst {dimension_numbers = #tpu.dot_dimension_numbers<[1], [0], [0], [1], [0, 0, 1, 1], [], []>} : vector<128x784xbf16>, vector<784x256xbf16>, vector<128x256xf32> -> vector<128x256xf32>
    %c0_3 = arith.constant 0 : index
    %c0_4 = arith.constant 0 : index
    %4 = vector.load %arg3[%c0_3, %c0_4] : memref<1x256xf32, #tpu.memory_space<vmem>>, vector<1x256xf32>
    %5 = vector.broadcast %4 : vector<1x256xf32> to vector<128x256xf32>
    %6 = arith.addf %3, %5 : vector<128x256xf32>
    %cst_5 = arith.constant 0.000000e+00 : f32
    %7 = vector.broadcast %cst_5 : f32 to vector<128x256xf32>
    %8 = arith.maximumf %6, %7 : vector<128x256xf32>
    %9 = arith.truncf %8 : vector<128x256xf32> to vector<128x256xbf16>
    %c0_6 = arith.constant 0 : index
    %c0_7 = arith.constant 0 : index
    %10 = vector.load %arg4[%c0_6, %c0_7] : memref<256x128xbf16, #tpu.memory_space<vmem>>, vector<256x128xbf16>
    %cst_8 = arith.constant dense<0.000000e+00> : vector<128x128xf32>
    %11 = tpu.matmul %9, %10, %cst_8 {dimension_numbers = #tpu.dot_dimension_numbers<[1], [0], [0], [1], [0, 0, 1, 1], [], []>} : vector<128x256xbf16>, vector<256x128xbf16>, vector<128x128xf32> -> vector<128x128xf32>
    %c0_9 = arith.constant 0 : index
    %c0_10 = arith.constant 0 : index
    %12 = vector.load %arg5[%c0_9, %c0_10] : memref<1x128xf32, #tpu.memory_space<vmem>>, vector<1x128xf32>
    %13 = vector.broadcast %12 : vector<1x128xf32> to vector<128x128xf32>
    %14 = arith.addf %11, %13 : vector<128x128xf32>
    %cst_11 = arith.constant 0.000000e+00 : f32
    %15 = vector.broadcast %cst_11 : f32 to vector<128x128xf32>
    %16 = arith.maximumf %14, %15 : vector<128x128xf32>
    %17 = arith.truncf %16 : vector<128x128xf32> to vector<128x128xbf16>
    %c0_12 = arith.constant 0 : index
    %c0_13 = arith.constant 0 : index
    %18 = vector.load %arg6[%c0_12, %c0_13] : memref<128x10xbf16, #tpu.memory_space<vmem>>, vector<128x10xbf16>
    %cst_14 = arith.constant dense<0.000000e+00> : vector<128x10xf32>
    %19 = tpu.matmul %17, %18, %cst_14 {dimension_numbers = #tpu.dot_dimension_numbers<[1], [0], [0], [1], [0, 0, 1, 1], [], []>} : vector<128x128xbf16>, vector<128x10xbf16>, vector<128x10xf32> -> vector<128x10xf32>
    %c0_15 = arith.constant 0 : index
    %c0_16 = arith.constant 0 : index
    %20 = vector.load %arg7[%c0_15, %c0_16] : memref<1x10xf32, #tpu.memory_space<vmem>>, vector<1x10xf32>
    %21 = vector.broadcast %20 : vector<1x10xf32> to vector<128x10xf32>
    %22 = arith.addf %19, %21 : vector<128x10xf32>
    %c0_17 = arith.constant 0 : index
    %c0_18 = arith.constant 0 : index
    %23 = vector.load %arg8[%c0_17, %c0_18] : memref<128x10xf32, #tpu.memory_space<vmem>>, vector<128x10xf32>
    tpu.vector_store %arg8[%c0_17, %c0_18], %22 {strides = array<i32>} : memref<128x10xf32, #tpu.memory_space<vmem>>, vector<128x10xf32>,
    return
  }
  func.func @transform_0(%arg0: i32) -> (i32, i32) {
    %c0_i32 = arith.constant 0 : i32
    %c0_i32_0 = arith.constant 0 : i32
    return %arg0, %c0_i32 : i32, i32
  }
  func.func @transform_1(%arg0: i32) -> (i32, i32) {
    %c0_i32 = arith.constant 0 : i32
    %c0_i32_0 = arith.constant 0 : i32
    %c0_i32_1 = arith.constant 0 : i32
    return %c0_i32, %c0_i32_0 : i32, i32
  }
  func.func @transform_2(%arg0: i32) -> (i32, i32) {
    %c0_i32 = arith.constant 0 : i32
    %c0_i32_0 = arith.constant 0 : i32
    %c0_i32_1 = arith.constant 0 : i32
    return %c0_i32, %c0_i32_0 : i32, i32
  }
  func.func @transform_3(%arg0: i32) -> (i32, i32) {
    %c0_i32 = arith.constant 0 : i32
    %c0_i32_0 = arith.constant 0 : i32
    %c0_i32_1 = arith.constant 0 : i32
    return %c0_i32, %c0_i32_0 : i32, i32
  }
  func.func @transform_4(%arg0: i32) -> (i32, i32) {
    %c0_i32 = arith.constant 0 : i32
    %c0_i32_0 = arith.constant 0 : i32
    %c0_i32_1 = arith.constant 0 : i32
    return %c0_i32, %c0_i32_0 : i32, i32
  }
  func.func @transform_5(%arg0: i32) -> (i32, i32) {
    %c0_i32 = arith.constant 0 : i32
    %c0_i32_0 = arith.constant 0 : i32
    %c0_i32_1 = arith.constant 0 : i32
    return %c0_i32, %c0_i32_0 : i32, i32
  }
  func.func @transform_6(%arg0: i32) -> (i32, i32) {
    %c0_i32 = arith.constant 0 : i32
    %c0_i32_0 = arith.constant 0 : i32
    %c0_i32_1 = arith.constant 0 : i32
    return %c0_i32, %c0_i32_0 : i32, i32
  }
  func.func @transform_7(%arg0: i32) -> (i32, i32) {
    %c0_i32 = arith.constant 0 : i32
    %c0_i32_0 = arith.constant 0 : i32
    return %arg0, %c0_i32 : i32, i32
  }
}

</mosaic_0001>

<llo_original>
// kernel: tpu_custom_call.1
$region0: #{tpu_custom_call.1}
  #allocation0 [shape = 'u32[]', space=smem, size = 0x4, offset = 0x4, fixed_abs, tag = 'smem constant byte address 0x4 - core index']
  #allocation1 [shape = 'u32[144,128]{1,0:T(1,128)}', space=vmem, size = 0x12000, scoped, tag = 'internal scratch']
  %s0 = inlined_call_operand.vmem [shape: f32[4,784], index: 0, kind: input, shape index: {}]
  %s1 = inlined_call_operand.hbm [shape: bf16[784,256], index: 1, kind: input, shape index: {}]
  %s2 = inlined_call_operand.vmem [shape: f32[1,256], index: 2, kind: input, shape index: {}]
  %s3 = inlined_call_operand.hbm [shape: bf16[256,128], index: 3, kind: input, shape index: {}]
  %s4 = inlined_call_operand.vmem [shape: f32[1,128], index: 4, kind: input, shape index: {}]
  %s5 = inlined_call_operand.vmem [shape: bf16[128,10], index: 5, kind: input, shape index: {}]
  %s6 = inlined_call_operand.vmem [shape: f32[1,10], index: 6, kind: input, shape index: {}]
  %s7 = inlined_call_operand.hbm [shape: f32[4,10], index: 7, kind: output, shape index: {}]
  %s8 = sld [smem:[#allocation0]]
  $region46: #{tpu_custom_call.1} parent=0
    _
  %s10 = ssub.s32 1, %s8
  %s11 = scalar_select 0, %s10, %s8
  $region1: #{tpu_custom_call.1} parent=0
    #allocation2 [shape = 'u8[401408]{0}', space=vmem, size = 0x62000, scoped, tag = 'input window, operand 1, single buffered']
    #allocation3 [shape = 's32[1]{0}', space=sflag, size = 0x4, scoped, tag = 'scoped memory for tpu_custom_call.1']
    #allocation4 [shape = 's32[1]{0}', space=sflag, size = 0x4, scoped, tag = 'scoped memory for tpu_custom_call.1']
    #allocation5 [shape = 'u8[65536]{0}', space=vmem, size = 0x10000, scoped, tag = 'input window, operand 3, single buffered']
    #allocation6 [shape = 's32[1]{0}', space=sflag, size = 0x4, scoped, tag = 'scoped memory for tpu_custom_call.1']
    #allocation7 [shape = 'u8[65536]{0}', space=vmem, size = 0x10000, scoped, tag = 'output window, operand 0, single buffered']
    %12 = vsyncpa [#allocation3], 0
    %13 = vsyncpa [#allocation6], 0
    %14 = vsyncpa [#allocation4], 0
    // Predicated region
    $region2: #{tpu_custom_call.1} parent=1 // pred_check
      _
    $region3: #{tpu_custom_call.1} parent=1 // pred_check_branch
      %16 = sbr.rel (0) target = $region5
    $region4: #{tpu_custom_call.1} parent=1 // pred_region
      _
    $region5: #{tpu_custom_call.1} parent=1 // pred_fallthru
      _
    // Predicated region
    $region6: #{tpu_custom_call.1} parent=1 // pred_check
      _
    $region7: #{tpu_custom_call.1} parent=1 // pred_check_branch
      %18 = sbr.rel (0) target = $region9
    $region8: #{tpu_custom_call.1} parent=1 // pred_region
      %s20 = ssub.s32 12544, 12544
      %21 = vsyncadd [#allocation3], %s20
      %s22 = sshll.u32 [#allocation2], 4
      %s23 = int_to_ptr.vmem [resolvable:$true] %s22
      %28 = dma.hbm_to_vmem [thread:$0]  %s1, 12544, %s23, [#allocation3], 128, 128, 8
    $region9: #{tpu_custom_call.1} parent=1 // pred_fallthru
      _
    // Predicated region
    $region10: #{tpu_custom_call.1} parent=1 // pred_check
      _
    $region11: #{tpu_custom_call.1} parent=1 // pred_check_branch
      %30 = sbr.rel (0) target = $region13
    $region12: #{tpu_custom_call.1} parent=1 // pred_region
      _
    $region13: #{tpu_custom_call.1} parent=1 // pred_fallthru
      _
    // Predicated region
    $region14: #{tpu_custom_call.1} parent=1 // pred_check
      _
    $region15: #{tpu_custom_call.1} parent=1 // pred_check_branch
      %32 = sbr.rel (0) target = $region17
    $region16: #{tpu_custom_call.1} parent=1 // pred_region
      %s34 = ssub.s32 2048, 2048
      %35 = vsyncadd [#allocation6], %s34
      %s36 = sshll.u32 [#allocation5], 4
      %s37 = int_to_ptr.vmem [resolvable:$true] %s36
      %42 = dma.hbm_to_vmem [thread:$0]  %s3, 2048, %s37, [#allocation6], 64, 64, 4
    $region17: #{tpu_custom_call.1} parent=1 // pred_fallthru
      _
    // Predicated region
    $region18: #{tpu_custom_call.1} parent=1 // pred_check
      _
    $region19: #{tpu_custom_call.1} parent=1 // pred_check_branch
      %44 = sbr.rel (0) target = $region21
    $region20: #{tpu_custom_call.1} parent=1 // pred_region
      _
    $region21: #{tpu_custom_call.1} parent=1 // pred_fallthru
      _
    // Predicated region
    $region22: #{tpu_custom_call.1} parent=1 // pred_check
      _
    $region23: #{tpu_custom_call.1} parent=1 // pred_check_branch
      %46 = sbr.rel (0) target = $region25
    $region24: #{tpu_custom_call.1} parent=1 // pred_region
      _
    $region25: #{tpu_custom_call.1} parent=1 // pred_fallthru
      _
    // Predicated region
    $region26: #{tpu_custom_call.1} parent=1 // pred_check
      _
    $region27: #{tpu_custom_call.1} parent=1 // pred_check_branch
      %48 = sbr.rel (0) target = $region29
    $region28: #{tpu_custom_call.1} parent=1 // pred_region
      _
    $region29: #{tpu_custom_call.1} parent=1 // pred_fallthru
      _
    // Predicated region
    $region30: #{tpu_custom_call.1} parent=1 // pred_check
      _
    $region31: #{tpu_custom_call.1} parent=1 // pred_check_branch
      %50 = sbr.rel (0) target = $region33
    $region32: #{tpu_custom_call.1} parent=1 // pred_region
      %51 = dma.done [#allocation3], 12544
    $region33: #{tpu_custom_call.1} parent=1 // pred_fallthru
      _
    // Predicated region
    $region34: #{tpu_custom_call.1} parent=1 // pred_check
      _
    $region35: #{tpu_custom_call.1} parent=1 // pred_check_branch
      %53 = sbr.rel (0) target = $region37
    $region36: #{tpu_custom_call.1} parent=1 // pred_region
      %54 = dma.done [#allocation6], 2048
    $region37: #{tpu_custom_call.1} parent=1 // pred_fallthru
      _
    %v56 = vld [vmem:[%s0] sm:$0xff]
    %v57 = vld [vmem:[%s0 + $0x8] sm:$0xff]
    %v58 = vld [vmem:[%s0 + $0x10] sm:$0xff]
    %v59 = vld [vmem:[%s0 + $0x18] sm:$0xf]
    %v60 = vld [vmem:[%s0 + $0x1c] sm:$0xff]
    %v61 = vld [vmem:[%s0 + $0x24] sm:$0xff]
    %v62 = vld [vmem:[%s0 + $0x2c] sm:$0xff]
    %v63 = vld [vmem:[%s0 + $0x34] sm:$0xf]
    %v64 = vld [vmem:[%s0 + $0x38] sm:$0xff]
    %v65 = vld [vmem:[%s0 + $0x40] sm:$0xff]
    %v66 = vld [vmem:[%s0 + $0x48] sm:$0xff]
    %v67 = vld [vmem:[%s0 + $0x50] sm:$0xf]
    %v68 = vld [vmem:[%s0 + $0x54] sm:$0xff]
    %v69 = vld [vmem:[%s0 + $0x5c] sm:$0xff]
    %v70 = vld [vmem:[%s0 + $0x64] sm:$0xff]
    %v71 = vld [vmem:[%s0 + $0x6c] sm:$0xf]
    %v72 = vld [vmem:[%s0 + $0x70] sm:$0xff]
    %v73 = vld [vmem:[%s0 + $0x78] sm:$0xff]
    %v74 = vld [vmem:[%s0 + $0x80] sm:$0xff]
    %v75 = vld [vmem:[%s0 + $0x88] sm:$0xf]
    %v76 = vld [vmem:[%s0 + $0x8c] sm:$0xff]
    %v77 = vld [vmem:[%s0 + $0x94] sm:$0xff]
    %v78 = vld [vmem:[%s0 + $0x9c] sm:$0xff]
    %v79 = vld [vmem:[%s0 + $0xa4] sm:$0xf]
    %v80 = vld [vmem:[%s0 + $0xa8] sm:$0xff]
    %v81 = vld [vmem:[%s0 + $0xb0] sm:$0xff]
    %v82 = vld [vmem:[%s0 + $0xb8] sm:$0xff]
    %v83 = vld [vmem:[%s0 + $0xc0] sm:$0xf]
    %v84 = vld [vmem:[%s0 + $0xc4] sm:$0xff]
    %v85 = vld [vmem:[%s0 + $0xcc] sm:$0xff]
    %v86 = vld [vmem:[%s0 + $0xd4] sm:$0xff]
    %v87 = vld [vmem:[%s0 + $0xdc] sm:$0xf]
    %v88 = vld [vmem:[%s0 + $0xe0] sm:$0xff]
    %v89 = vld [vmem:[%s0 + $0xe8] sm:$0xff]
    %v90 = vld [vmem:[%s0 + $0xf0] sm:$0xff]
    %v91 = vld [vmem:[%s0 + $0xf8] sm:$0xf]
    %v92 = vld [vmem:[%s0 + $0xfc] sm:$0xff]
    %v93 = vld [vmem:[%s0 + $0x104] sm:$0xff]
    %v94 = vld [vmem:[%s0 + $0x10c] sm:$0xff]
    %v95 = vld [vmem:[%s0 + $0x114] sm:$0xf]
    %v96 = vld [vmem:[%s0 + $0x118] sm:$0xff]
    %v97 = vld [vmem:[%s0 + $0x120] sm:$0xff]
    %v98 = vld [vmem:[%s0 + $0x128] sm:$0xff]
    %v99 = vld [vmem:[%s0 + $0x130] sm:$0xf]
    %v100 = vld [vmem:[%s0 + $0x134] sm:$0xff]
    %v101 = vld [vmem:[%s0 + $0x13c] sm:$0xff]
    %v102 = vld [vmem:[%s0 + $0x144] sm:$0xff]
    %v103 = vld [vmem:[%s0 + $0x14c] sm:$0xf]
    %v104 = vld [vmem:[%s0 + $0x150] sm:$0xff]
    %v105 = vld [vmem:[%s0 + $0x158] sm:$0xff]
    %v106 = vld [vmem:[%s0 + $0x160] sm:$0xff]
    %v107 = vld [vmem:[%s0 + $0x168] sm:$0xf]
    %v108 = vld [vmem:[%s0 + $0x16c] sm:$0xff]
    %v109 = vld [vmem:[%s0 + $0x174] sm:$0xff]
    %v110 = vld [vmem:[%s0 + $0x17c] sm:$0xff]
    %v111 = vld [vmem:[%s0 + $0x184] sm:$0xf]
    %v112 = vld [vmem:[%s0 + $0x188] sm:$0xff]
    %v113 = vld [vmem:[%s0 + $0x190] sm:$0xff]
    %v114 = vld [vmem:[%s0 + $0x198] sm:$0xff]
    %v115 = vld [vmem:[%s0 + $0x1a0] sm:$0xf]
    %v116 = vld [vmem:[%s0 + $0x1a4] sm:$0xff]
    %v117 = vld [vmem:[%s0 + $0x1ac] sm:$0xff]
    %v118 = vld [vmem:[%s0 + $0x1b4] sm:$0xff]
    %v119 = vld [vmem:[%s0 + $0x1bc] sm:$0xf]
    %v120 = vld [vmem:[%s0 + $0x1c0] sm:$0xff]
    %v121 = vld [vmem:[%s0 + $0x1c8] sm:$0xff]
    %v122 = vld [vmem:[%s0 + $0x1d0] sm:$0xff]
    %v123 = vld [vmem:[%s0 + $0x1d8] sm:$0xf]
    %v124 = vld [vmem:[%s0 + $0x1dc] sm:$0xff]
    %v125 = vld [vmem:[%s0 + $0x1e4] sm:$0xff]
    %v126 = vld [vmem:[%s0 + $0x1ec] sm:$0xff]
    %v127 = vld [vmem:[%s0 + $0x1f4] sm:$0xf]
    %v128 = vld [vmem:[%s0 + $0x1f8] sm:$0xff]
    %v129 = vld [vmem:[%s0 + $0x200] sm:$0xff]
    %v130 = vld [vmem:[%s0 + $0x208] sm:$0xff]
    %v131 = vld [vmem:[%s0 + $0x210] sm:$0xf]
    %v132 = vld [vmem:[%s0 + $0x214] sm:$0xff]
    %v133 = vld [vmem:[%s0 + $0x21c] sm:$0xff]
    %v134 = vld [vmem:[%s0 + $0x224] sm:$0xff]
    %v135 = vld [vmem:[%s0 + $0x22c] sm:$0xf]
    %v136 = vld [vmem:[%s0 + $0x230] sm:$0xff]
    %v137 = vld [vmem:[%s0 + $0x238] sm:$0xff]
    %v138 = vld [vmem:[%s0 + $0x240] sm:$0xff]
    %v139 = vld [vmem:[%s0 + $0x248] sm:$0xf]
    %v140 = vld [vmem:[%s0 + $0x24c] sm:$0xff]
    %v141 = vld [vmem:[%s0 + $0x254] sm:$0xff]
    %v142 = vld [vmem:[%s0 + $0x25c] sm:$0xff]
    %v143 = vld [vmem:[%s0 + $0x264] sm:$0xf]
    %v144 = vld [vmem:[%s0 + $0x268] sm:$0xff]
    %v145 = vld [vmem:[%s0 + $0x270] sm:$0xff]
    %v146 = vld [vmem:[%s0 + $0x278] sm:$0xff]
    %v147 = vld [vmem:[%s0 + $0x280] sm:$0xf]
    %v148 = vld [vmem:[%s0 + $0x284] sm:$0xff]
    %v149 = vld [vmem:[%s0 + $0x28c] sm:$0xff]
    %v150 = vld [vmem:[%s0 + $0x294] sm:$0xff]
    %v151 = vld [vmem:[%s0 + $0x29c] sm:$0xf]
    %v152 = vld [vmem:[%s0 + $0x2a0] sm:$0xff]
    %v153 = vld [vmem:[%s0 + $0x2a8] sm:$0xff]
    %v154 = vld [vmem:[%s0 + $0x2b0] sm:$0xff]
    %v155 = vld [vmem:[%s0 + $0x2b8] sm:$0xf]
    %v156 = vld [vmem:[%s0 + $0x2bc] sm:$0xff]
    %v157 = vld [vmem:[%s0 + $0x2c4] sm:$0xff]
    %v158 = vld [vmem:[%s0 + $0x2cc] sm:$0xff]
    %v159 = vld [vmem:[%s0 + $0x2d4] sm:$0xf]
    %v160 = vld [vmem:[%s0 + $0x2d8] sm:$0xff]
    %v161 = vld [vmem:[%s0 + $0x2e0] sm:$0xff]
    %v162 = vld [vmem:[%s0 + $0x2e8] sm:$0xff]
    %v163 = vld [vmem:[%s0 + $0x2f0] sm:$0xf]
    %v164 = vld [vmem:[%s0 + $0x2f4] sm:$0xff]
    %v165 = vld [vmem:[%s0 + $0x2fc] sm:$0xff]
    %v166 = vld [vmem:[%s0 + $0x304] sm:$0xff]
    %v167 = vld [vmem:[%s0 + $0x30c] sm:$0xf]
    %v168 = vld [vmem:[%s0 + $0x310] sm:$0xff]
    %v169 = vld [vmem:[%s0 + $0x318] sm:$0xff]
    %v170 = vld [vmem:[%s0 + $0x320] sm:$0xff]
    %v171 = vld [vmem:[%s0 + $0x328] sm:$0xf]
    %v172 = vld [vmem:[%s0 + $0x32c] sm:$0xff]
    %v173 = vld [vmem:[%s0 + $0x334] sm:$0xff]
    %v174 = vld [vmem:[%s0 + $0x33c] sm:$0xff]
    %v175 = vld [vmem:[%s0 + $0x344] sm:$0xf]
    %v176 = vld [vmem:[%s0 + $0x348] sm:$0xff]
    %v177 = vld [vmem:[%s0 + $0x350] sm:$0xff]
    %v178 = vld [vmem:[%s0 + $0x358] sm:$0xff]
    %v179 = vld [vmem:[%s0 + $0x360] sm:$0xf]
    %v180 = vld [vmem:[%s0 + $0x364] sm:$0xff]
    %v181 = vld [vmem:[%s0 + $0x36c] sm:$0xff]
    %v182 = vld [vmem:[%s0 + $0x374] sm:$0xff]
    %v183 = vld [vmem:[%s0 + $0x37c] sm:$0xf]
    %v312 = vcombine.low %v56, %v60
    %v313 = vcombine.high %v56, %v60
    %v314 = vcombine.low %v57, %v61
    %v315 = vcombine.high %v57, %v61
    %v316 = vcombine.low %v58, %v62
    %v317 = vcombine.high %v58, %v62
    %v318 = vcombine.low %v59, %v63
    %v319 = vcombine.low %v64, %v68
    %v320 = vcombine.high %v64, %v68
    %v321 = vcombine.low %v65, %v69
    %v322 = vcombine.high %v65, %v69
    %v323 = vcombine.low %v66, %v70
    %v324 = vcombine.high %v66, %v70
    %v325 = vcombine.low %v67, %v71
    %v326 = vcombine.low %v72, %v76
    %v327 = vcombine.high %v72, %v76
    %v328 = vcombine.low %v73, %v77
    %v329 = vcombine.high %v73, %v77
    %v330 = vcombine.low %v74, %v78
    %v331 = vcombine.high %v74, %v78
    %v332 = vcombine.low %v75, %v79
    %v333 = vcombine.low %v80, %v84
    %v334 = vcombine.high %v80, %v84
    %v335 = vcombine.low %v81, %v85
    %v336 = vcombine.high %v81, %v85
    %v337 = vcombine.low %v82, %v86
    %v338 = vcombine.high %v82, %v86
    %v339 = vcombine.low %v83, %v87
    %v340 = vcombine.low %v88, %v92
    %v341 = vcombine.high %v88, %v92
    %v342 = vcombine.low %v89, %v93
    %v343 = vcombine.high %v89, %v93
    %v344 = vcombine.low %v90, %v94
    %v345 = vcombine.high %v90, %v94
    %v346 = vcombine.low %v91, %v95
    %v347 = vcombine.low %v96, %v100
    %v348 = vcombine.high %v96, %v100
    %v349 = vcombine.low %v97, %v101
    %v350 = vcombine.high %v97, %v101
    %v351 = vcombine.low %v98, %v102
    %v352 = vcombine.high %v98, %v102
    %v353 = vcombine.low %v99, %v103
    %v354 = vcombine.low %v104, %v108
    %v355 = vcombine.high %v104, %v108
    %v356 = vcombine.low %v105, %v109
    %v357 = vcombine.high %v105, %v109
    %v358 = vcombine.low %v106, %v110
    %v359 = vcombine.high %v106, %v110
    %v360 = vcombine.low %v107, %v111
    %v361 = vcombine.low %v112, %v116
    %v362 = vcombine.high %v112, %v116
    %v363 = vcombine.low %v113, %v117
    %v364 = vcombine.high %v113, %v117
    %v365 = vcombine.low %v114, %v118
    %v366 = vcombine.high %v114, %v118
    %v367 = vcombine.low %v115, %v119
    %v368 = vcombine.low %v120, %v124
    %v369 = vcombine.high %v120, %v124
    %v370 = vcombine.low %v121, %v125
    %v371 = vcombine.high %v121, %v125
    %v372 = vcombine.low %v122, %v126
    %v373 = vcombine.high %v122, %v126
    %v374 = vcombine.low %v123, %v127
    %v375 = vcombine.low %v128, %v132
    %v376 = vcombine.high %v128, %v132
    %v377 = vcombine.low %v129, %v133
    %v378 = vcombine.high %v129, %v133
    %v379 = vcombine.low %v130, %v134
    %v380 = vcombine.high %v130, %v134
    %v381 = vcombine.low %v131, %v135
    %v382 = vcombine.low %v136, %v140
    %v383 = vcombine.high %v136, %v140
    %v384 = vcombine.low %v137, %v141
    %v385 = vcombine.high %v137, %v141
    %v386 = vcombine.low %v138, %v142
    %v387 = vcombine.high %v138, %v142
    %v388 = vcombine.low %v139, %v143
    %v389 = vcombine.low %v144, %v148
    %v390 = vcombine.high %v144, %v148
    %v391 = vcombine.low %v145, %v149
    %v392 = vcombine.high %v145, %v149
    %v393 = vcombine.low %v146, %v150
    %v394 = vcombine.high %v146, %v150
    %v395 = vcombine.low %v147, %v151
    %v396 = vcombine.low %v152, %v156
    %v397 = vcombine.high %v152, %v156
    %v398 = vcombine.low %v153, %v157
    %v399 = vcombine.high %v153, %v157
    %v400 = vcombine.low %v154, %v158
    %v401 = vcombine.high %v154, %v158
    %v402 = vcombine.low %v155, %v159
    %v403 = vcombine.low %v160, %v164
    %v404 = vcombine.high %v160, %v164
    %v405 = vcombine.low %v161, %v165
    %v406 = vcombine.high %v161, %v165
    %v407 = vcombine.low %v162, %v166
    %v408 = vcombine.high %v162, %v166
    %v409 = vcombine.low %v163, %v167
    %v410 = vcombine.low %v168, %v172
    %v411 = vcombine.high %v168, %v172
    %v412 = vcombine.low %v169, %v173
    %v413 = vcombine.high %v169, %v173
    %v414 = vcombine.low %v170, %v174
    %v415 = vcombine.high %v170, %v174
    %v416 = vcombine.low %v171, %v175
    %v417 = vcombine.low %v176, %v180
    %v418 = vcombine.high %v176, %v180
    %v419 = vcombine.low %v177, %v181
    %v420 = vcombine.high %v177, %v181
    %v421 = vcombine.low %v178, %v182
    %v422 = vcombine.high %v178, %v182
    %v423 = vcombine.low %v179, %v183
    %v536 = vpack.c.bf16 %v319, %v312
    %v537 = vpack.c.bf16 %v320, %v313
    %v538 = vpack.c.bf16 %v321, %v314
    %v539 = vpack.c.bf16 %v322, %v315
    %v540 = vpack.c.bf16 %v323, %v316
    %v541 = vpack.c.bf16 %v324, %v317
    %v542 = vpack.c.bf16 %v325, %v318
    %v543 = vpack.c.bf16 %v333, %v326
    %v544 = vpack.c.bf16 %v334, %v327
    %v545 = vpack.c.bf16 %v335, %v328
    %v546 = vpack.c.bf16 %v336, %v329
    %v547 = vpack.c.bf16 %v337, %v330
    %v548 = vpack.c.bf16 %v338, %v331
    %v549 = vpack.c.bf16 %v339, %v332
    %v550 = vpack.c.bf16 %v347, %v340
    %v551 = vpack.c.bf16 %v348, %v341
    %v552 = vpack.c.bf16 %v349, %v342
    %v553 = vpack.c.bf16 %v350, %v343
    %v554 = vpack.c.bf16 %v351, %v344
    %v555 = vpack.c.bf16 %v352, %v345
    %v556 = vpack.c.bf16 %v353, %v346
    %v557 = vpack.c.bf16 %v361, %v354
    %v558 = vpack.c.bf16 %v362, %v355
    %v559 = vpack.c.bf16 %v363, %v356
    %v560 = vpack.c.bf16 %v364, %v357
    %v561 = vpack.c.bf16 %v365, %v358
    %v562 = vpack.c.bf16 %v366, %v359
    %v563 = vpack.c.bf16 %v367, %v360
    %v564 = vpack.c.bf16 %v375, %v368
    %v565 = vpack.c.bf16 %v376, %v369
    %v566 = vpack.c.bf16 %v377, %v370
    %v567 = vpack.c.bf16 %v378, %v371
    %v568 = vpack.c.bf16 %v379, %v372
    %v569 = vpack.c.bf16 %v380, %v373
    %v570 = vpack.c.bf16 %v381, %v374
    %v571 = vpack.c.bf16 %v389, %v382
    %v572 = vpack.c.bf16 %v390, %v383
    %v573 = vpack.c.bf16 %v391, %v384
    %v574 = vpack.c.bf16 %v392, %v385
    %v575 = vpack.c.bf16 %v393, %v386
    %v576 = vpack.c.bf16 %v394, %v387
    %v577 = vpack.c.bf16 %v395, %v388
    %v578 = vpack.c.bf16 %v403, %v396
    %v579 = vpack.c.bf16 %v404, %v397
    %v580 = vpack.c.bf16 %v405, %v398
    %v581 = vpack.c.bf16 %v406, %v399
    %v582 = vpack.c.bf16 %v407, %v400
    %v583 = vpack.c.bf16 %v408, %v401
    %v584 = vpack.c.bf16 %v409, %v402
    %v585 = vpack.c.bf16 %v417, %v410
    %v586 = vpack.c.bf16 %v418, %v411
    %v587 = vpack.c.bf16 %v419, %v412
    %v588 = vpack.c.bf16 %v420, %v413
    %v589 = vpack.c.bf16 %v421, %v414
    %v590 = vpack.c.bf16 %v422, %v415
    %v591 = vpack.c.bf16 %v423, %v416
    %v592 = vld [vmem:[#allocation2] sm:$0xff]
    %v593 = vld [vmem:[#allocation2 + $0x8] sm:$0xff]
    %v594 = vld [vmem:[#allocation2 + $0x10] sm:$0xff]
    %v595 = vld [vmem:[#allocation2 + $0x18] sm:$0xff]
    %v596 = vld [vmem:[#allocation2 + $0x20] sm:$0xff]
    %v597 = vld [vmem:[#allocation2 + $0x28] sm:$0xff]
    %v598 = vld [vmem:[#allocation2 + $0x30] sm:$0xff]
    %v599 = vld [vmem:[#allocation2 + $0x38] sm:$0xff]
    %v600 = vld [vmem:[#allocation2 + $0x40] sm:$0xff]
    %v601 = vld [vmem:[#allocation2 + $0x48] sm:$0xff]
    %v602 = vld [vmem:[#allocation2 + $0x50] sm:$0xff]
    %v603 = vld [vmem:[#allocation2 + $0x58] sm:$0xff]
    %v604 = vld [vmem:[#allocation2 + $0x60] sm:$0xff]
    %v605 = vld [vmem:[#allocation2 + $0x68] sm:$0xff]
    %v606 = vld [vmem:[#allocation2 + $0x70] sm:$0xff]
    %v607 = vld [vmem:[#allocation2 + $0x78] sm:$0xff]
    %v608 = vld [vmem:[#allocation2 + $0x80] sm:$0xff]
    %v609 = vld [vmem:[#allocation2 + $0x88] sm:$0xff]
    %v610 = vld [vmem:[#allocation2 + $0x90] sm:$0xff]
    %v611 = vld [vmem:[#allocation2 + $0x98] sm:$0xff]
    %v612 = vld [vmem:[#allocation2 + $0xa0] sm:$0xff]
    %v613 = vld [vmem:[#allocation2 + $0xa8] sm:$0xff]
    %v614 = vld [vmem:[#allocation2 + $0xb0] sm:$0xff]
    %v615 = vld [vmem:[#allocation2 + $0xb8] sm:$0xff]
    %v616 = vld [vmem:[#allocation2 + $0xc0] sm:$0xff]
    %v617 = vld [vmem:[#allocation2 + $0xc8] sm:$0xff]
    %v618 = vld [vmem:[#allocation2 + $0xd0] sm:$0xff]
    %v619 = vld [vmem:[#allocation2 + $0xd8] sm:$0xff]
    %v620 = vld [vmem:[#allocation2 + $0xe0] sm:$0xff]
    %v621 = vld [vmem:[#allocation2 + $0xe8] sm:$0xff]
    %v622 = vld [vmem:[#allocation2 + $0xf0] sm:$0xff]
    %v623 = vld [vmem:[#allocation2 + $0xf8] sm:$0xff]
    %v624 = vld [vmem:[#allocation2 + $0x100] sm:$0xff]
    %v625 = vld [vmem:[#allocation2 + $0x108] sm:$0xff]
    %v626 = vld [vmem:[#allocation2 + $0x110] sm:$0xff]
    %v627 = vld [vmem:[#allocation2 + $0x118] sm:$0xff]
    %v628 = vld [vmem:[#allocation2 + $0x120] sm:$0xff]
    %v629 = vld [vmem:[#allocation2 + $0x128] sm:$0xff]
    %v630 = vld [vmem:[#allocation2 + $0x130] sm:$0xff]
    %v631 = vld [vmem:[#allocation2 + $0x138] sm:$0xff]
    %v632 = vld [vmem:[#allocation2 + $0x140] sm:$0xff]
    %v633 = vld [vmem:[#allocation2 + $0x148] sm:$0xff]
    %v634 = vld [vmem:[#allocation2 + $0x150] sm:$0xff]
    %v635 = vld [vmem:[#allocation2 + $0x158] sm:$0xff]
    %v636 = vld [vmem:[#allocation2 + $0x160] sm:$0xff]
    %v637 = vld [vmem:[#allocation2 + $0x168] sm:$0xff]
    %v638 = vld [vmem:[#allocation2 + $0x170] sm:$0xff]
    %v639 = vld [vmem:[#allocation2 + $0x178] sm:$0xff]
    %v640 = vld [vmem:[#allocation2 + $0x180] sm:$0xff]
    %v641 = vld [vmem:[#allocation2 + $0x188] sm:$0xff]
    %v642 = vld [vmem:[#allocation2 + $0x190] sm:$0xff]
    %v643 = vld [vmem:[#allocation2 + $0x198] sm:$0xff]
    %v644 = vld [vmem:[#allocation2 + $0x1a0] sm:$0xff]
    %v645 = vld [vmem:[#allocation2 + $0x1a8] sm:$0xff]
    %v646 = vld [vmem:[#allocation2 + $0x1b0] sm:$0xff]
    %v647 = vld [vmem:[#allocation2 + $0x1b8] sm:$0xff]
    %v648 = vld [vmem:[#allocation2 + $0x1c0] sm:$0xff]
    %v649 = vld [vmem:[#allocation2 + $0x1c8] sm:$0xff]
    %v650 = vld [vmem:[#allocation2 + $0x1d0] sm:$0xff]
    %v651 = vld [vmem:[#allocation2 + $0x1d8] sm:$0xff]
    %v652 = vld [vmem:[#allocation2 + $0x1e0] sm:$0xff]
    %v653 = vld [vmem:[#allocation2 + $0x1e8] sm:$0xff]
    %v654 = vld [vmem:[#allocation2 + $0x1f0] sm:$0xff]
    %v655 = vld [vmem:[#allocation2 + $0x1f8] sm:$0xff]
    %v656 = vld [vmem:[#allocation2 + $0x200] sm:$0xff]
    %v657 = vld [vmem:[#allocation2 + $0x208] sm:$0xff]
    %v658 = vld [vmem:[#allocation2 + $0x210] sm:$0xff]
    %v659 = vld [vmem:[#allocation2 + $0x218] sm:$0xff]
    %v660 = vld [vmem:[#allocation2 + $0x220] sm:$0xff]
    %v661 = vld [vmem:[#allocation2 + $0x228] sm:$0xff]
    %v662 = vld [vmem:[#allocation2 + $0x230] sm:$0xff]
    %v663 = vld [vmem:[#allocation2 + $0x238] sm:$0xff]
    %v664 = vld [vmem:[#allocation2 + $0x240] sm:$0xff]
    %v665 = vld [vmem:[#allocation2 + $0x248] sm:$0xff]
    %v666 = vld [vmem:[#allocation2 + $0x250] sm:$0xff]
    %v667 = vld [vmem:[#allocation2 + $0x258] sm:$0xff]
    %v668 = vld [vmem:[#allocation2 + $0x260] sm:$0xff]
    %v669 = vld [vmem:[#allocation2 + $0x268] sm:$0xff]
    %v670 = vld [vmem:[#allocation2 + $0x270] sm:$0xff]
    %v671 = vld [vmem:[#allocation2 + $0x278] sm:$0xff]
    %v672 = vld [vmem:[#allocation2 + $0x280] sm:$0xff]
    %v673 = vld [vmem:[#allocation2 + $0x288] sm:$0xff]
    %v674 = vld [vmem:[#allocation2 + $0x290] sm:$0xff]
    %v675 = vld [vmem:[#allocation2 + $0x298] sm:$0xff]
    %v676 = vld [vmem:[#allocation2 + $0x2a0] sm:$0xff]
    %v677 = vld [vmem:[#allocation2 + $0x2a8] sm:$0xff]
    %v678 = vld [vmem:[#allocation2 + $0x2b0] sm:$0xff]
    %v679 = vld [vmem:[#allocation2 + $0x2b8] sm:$0xff]
    %v680 = vld [vmem:[#allocation2 + $0x2c0] sm:$0xff]
    %v681 = vld [vmem:[#allocation2 + $0x2c8] sm:$0xff]
    %v682 = vld [vmem:[#allocation2 + $0x2d0] sm:$0xff]
    %v683 = vld [vmem:[#allocation2 + $0x2d8] sm:$0xff]
    %v684 = vld [vmem:[#allocation2 + $0x2e0] sm:$0xff]
    %v685 = vld [vmem:[#allocation2 + $0x2e8] sm:$0xff]
    %v686 = vld [vmem:[#allocation2 + $0x2f0] sm:$0xff]
    %v687 = vld [vmem:[#allocation2 + $0x2f8] sm:$0xff]
    %v688 = vld [vmem:[#allocation2 + $0x300] sm:$0xff]
    %v689 = vld [vmem:[#allocation2 + $0x308] sm:$0xff]
    %v690 = vld [vmem:[%s2] sm:$0x3]
    %v692 = vlaneseq
    %v693 = vshrl.u32 %v692, 7
    %v694 = vsub.s32 0, %v693
    %v695 = vrot.slane %v690, %v694
    %v696 = vlaneseq
    %v697 = vshrl.u32 %v696, 7
    %v698 = vsub.s32 1, %v697
    %v699 = vrot.slane %v690, %v698
    %v800 = vunpack.c.l.b16 %v592
    %v801 = vunpack.c.h.b16 %v592
    %v802 = vunpack.c.l.b16 %v593
    %v803 = vunpack.c.h.b16 %v593
    %v804 = vunpack.c.l.b16 %v594
    %v805 = vunpack.c.h.b16 %v594
    %v806 = vunpack.c.l.b16 %v595
    %v807 = vunpack.c.h.b16 %v595
    %v808 = vunpack.c.l.b16 %v596
    %v809 = vunpack.c.h.b16 %v596
    %v810 = vunpack.c.l.b16 %v597
    %v811 = vunpack.c.h.b16 %v597
    %v812 = vunpack.c.l.b16 %v598
    %v813 = vunpack.c.h.b16 %v598
    %v814 = vunpack.c.l.b16 %v599
    %v815 = vunpack.c.h.b16 %v599
    %v816 = vunpack.c.l.b16 %v600
    %v817 = vunpack.c.h.b16 %v600
    %v818 = vunpack.c.l.b16 %v601
    %v819 = vunpack.c.h.b16 %v601
    %v820 = vunpack.c.l.b16 %v602
    %v821 = vunpack.c.h.b16 %v602
    %v822 = vunpack.c.l.b16 %v603
    %v823 = vunpack.c.h.b16 %v603
    %v824 = vunpack.c.l.b16 %v604
    %v825 = vunpack.c.h.b16 %v604
    %v826 = vunpack.c.l.b16 %v605
    %v827 = vunpack.c.h.b16 %v605
    %v828 = vunpack.c.l.b16 %v606
    %v829 = vunpack.c.h.b16 %v606
    %v830 = vunpack.c.l.b16 %v607
    %v831 = vunpack.c.h.b16 %v607
    %v832 = vunpack.c.l.b16 %v608
    %v833 = vunpack.c.h.b16 %v608
    %v834 = vunpack.c.l.b16 %v609
    %v835 = vunpack.c.h.b16 %v609
    %v836 = vunpack.c.l.b16 %v610
    %v837 = vunpack.c.h.b16 %v610
    %v838 = vunpack.c.l.b16 %v611
    %v839 = vunpack.c.h.b16 %v611
    %v840 = vunpack.c.l.b16 %v612
    %v841 = vunpack.c.h.b16 %v612
    %v842 = vunpack.c.l.b16 %v613
    %v843 = vunpack.c.h.b16 %v613
    %v844 = vunpack.c.l.b16 %v614
    %v845 = vunpack.c.h.b16 %v614
    %v846 = vunpack.c.l.b16 %v615
    %v847 = vunpack.c.h.b16 %v615
    %v848 = vunpack.c.l.b16 %v616
    %v849 = vunpack.c.h.b16 %v616
    %v850 = vunpack.c.l.b16 %v617
    %v851 = vunpack.c.h.b16 %v617
    %v852 = vunpack.c.l.b16 %v618
    %v853 = vunpack.c.h.b16 %v618
    %v854 = vunpack.c.l.b16 %v619
    %v855 = vunpack.c.h.b16 %v619
    %v856 = vunpack.c.l.b16 %v620
    %v857 = vunpack.c.h.b16 %v620
    %v858 = vunpack.c.l.b16 %v621
    %v859 = vunpack.c.h.b16 %v621
    %v860 = vunpack.c.l.b16 %v622
    %v861 = vunpack.c.h.b16 %v622
    %v862 = vunpack.c.l.b16 %v623
    %v863 = vunpack.c.h.b16 %v623
    %v864 = vunpack.c.l.b16 %v624
    %v865 = vunpack.c.h.b16 %v624
    %v866 = vunpack.c.l.b16 %v625
    %v867 = vunpack.c.h.b16 %v625
    %v868 = vunpack.c.l.b16 %v626
    %v869 = vunpack.c.h.b16 %v626
    %v870 = vunpack.c.l.b16 %v627
    %v871 = vunpack.c.h.b16 %v627
    %v872 = vunpack.c.l.b16 %v628
    %v873 = vunpack.c.h.b16 %v628
    %v874 = vunpack.c.l.b16 %v629
    %v875 = vunpack.c.h.b16 %v629
    %v876 = vunpack.c.l.b16 %v630
    %v877 = vunpack.c.h.b16 %v630
    %v878 = vunpack.c.l.b16 %v631
    %v879 = vunpack.c.h.b16 %v631
    %v880 = vunpack.c.l.b16 %v632
    %v881 = vunpack.c.h.b16 %v632
    %v882 = vunpack.c.l.b16 %v633
    %v883 = vunpack.c.h.b16 %v633
    %v884 = vunpack.c.l.b16 %v634
    %v885 = vunpack.c.h.b16 %v634
    %v886 = vunpack.c.l.b16 %v635
    %v887 = vunpack.c.h.b16 %v635
    %v888 = vunpack.c.l.b16 %v636
    %v889 = vunpack.c.h.b16 %v636
    %v890 = vunpack.c.l.b16 %v637
    %v891 = vunpack.c.h.b16 %v637
    %v892 = vunpack.c.l.b16 %v638
    %v893 = vunpack.c.h.b16 %v638
    %v894 = vunpack.c.l.b16 %v639
    %v895 = vunpack.c.h.b16 %v639
    %v896 = vunpack.c.l.b16 %v640
    %v897 = vunpack.c.h.b16 %v640
    %v898 = vunpack.c.l.b16 %v641
    %v899 = vunpack.c.h.b16 %v641
    %v900 = vunpack.c.l.b16 %v642
    %v901 = vunpack.c.h.b16 %v642
    %v902 = vunpack.c.l.b16 %v643
    %v903 = vunpack.c.h.b16 %v643
    %v904 = vunpack.c.l.b16 %v644
    %v905 = vunpack.c.h.b16 %v644
    %v906 = vunpack.c.l.b16 %v645
    %v907 = vunpack.c.h.b16 %v645
    %v908 = vunpack.c.l.b16 %v646
    %v909 = vunpack.c.h.b16 %v646
    %v910 = vunpack.c.l.b16 %v647
    %v911 = vunpack.c.h.b16 %v647
    %v912 = vunpack.c.l.b16 %v648
    %v913 = vunpack.c.h.b16 %v648
    %v914 = vunpack.c.l.b16 %v649
    %v915 = vunpack.c.h.b16 %v649
    %v916 = vunpack.c.l.b16 %v650
    %v917 = vunpack.c.h.b16 %v650
    %v918 = vunpack.c.l.b16 %v651
    %v919 = vunpack.c.h.b16 %v651
    %v920 = vunpack.c.l.b16 %v652
    %v921 = vunpack.c.h.b16 %v652
    %v922 = vunpack.c.l.b16 %v653
    %v923 = vunpack.c.h.b16 %v653
    %v924 = vunpack.c.l.b16 %v654
    %v925 = vunpack.c.h.b16 %v654
    %v926 = vunpack.c.l.b16 %v655
    %v927 = vunpack.c.h.b16 %v655
    %v928 = vunpack.c.l.b16 %v656
    %v929 = vunpack.c.h.b16 %v656
    %v930 = vunpack.c.l.b16 %v657
    %v931 = vunpack.c.h.b16 %v657
    %v932 = vunpack.c.l.b16 %v658
    %v933 = vunpack.c.h.b16 %v658
    %v934 = vunpack.c.l.b16 %v659
    %v935 = vunpack.c.h.b16 %v659
    %v936 = vunpack.c.l.b16 %v660
    %v937 = vunpack.c.h.b16 %v660
    %v938 = vunpack.c.l.b16 %v661
    %v939 = vunpack.c.h.b16 %v661
    %v940 = vunpack.c.l.b16 %v662
    %v941 = vunpack.c.h.b16 %v662
    %v942 = vunpack.c.l.b16 %v663
    %v943 = vunpack.c.h.b16 %v663
    %v944 = vunpack.c.l.b16 %v664
    %v945 = vunpack.c.h.b16 %v664
    %v946 = vunpack.c.l.b16 %v665
    %v947 = vunpack.c.h.b16 %v665
    %v948 = vunpack.c.l.b16 %v666
    %v949 = vunpack.c.h.b16 %v666
    %v950 = vunpack.c.l.b16 %v667
    %v951 = vunpack.c.h.b16 %v667
    %v952 = vunpack.c.l.b16 %v668
    %v953 = vunpack.c.h.b16 %v668
    %v954 = vunpack.c.l.b16 %v669
    %v955 = vunpack.c.h.b16 %v669
    %v956 = vunpack.c.l.b16 %v670
    %v957 = vunpack.c.h.b16 %v670
    %v958 = vunpack.c.l.b16 %v671
    %v959 = vunpack.c.h.b16 %v671
    %v960 = vunpack.c.l.b16 %v672
    %v961 = vunpack.c.h.b16 %v672
    %v962 = vunpack.c.l.b16 %v673
    %v963 = vunpack.c.h.b16 %v673
    %v964 = vunpack.c.l.b16 %v674
    %v965 = vunpack.c.h.b16 %v674
    %v966 = vunpack.c.l.b16 %v675
    %v967 = vunpack.c.h.b16 %v675
    %v968 = vunpack.c.l.b16 %v676
    %v969 = vunpack.c.h.b16 %v676
    %v970 = vunpack.c.l.b16 %v677
    %v971 = vunpack.c.h.b16 %v677
    %v972 = vunpack.c.l.b16 %v678
    %v973 = vunpack.c.h.b16 %v678
    %v974 = vunpack.c.l.b16 %v679
    %v975 = vunpack.c.h.b16 %v679
    %v976 = vunpack.c.l.b16 %v680
    %v977 = vunpack.c.h.b16 %v680
    %v978 = vunpack.c.l.b16 %v681
    %v979 = vunpack.c.h.b16 %v681
    %v980 = vunpack.c.l.b16 %v682
    %v981 = vunpack.c.h.b16 %v682
    %v982 = vunpack.c.l.b16 %v683
    %v983 = vunpack.c.h.b16 %v683
    %v984 = vunpack.c.l.b16 %v684
    %v985 = vunpack.c.h.b16 %v684
    %v986 = vunpack.c.l.b16 %v685
    %v987 = vunpack.c.h.b16 %v685
    %v988 = vunpack.c.l.b16 %v686
    %v989 = vunpack.c.h.b16 %v686
    %v990 = vunpack.c.l.b16 %v687
    %v991 = vunpack.c.h.b16 %v687
    %v992 = vunpack.c.l.b16 %v688
    %v993 = vunpack.c.h.b16 %v688
    %v994 = vunpack.c.l.b16 %v689
    %v995 = vunpack.c.h.b16 %v689
    %v996 = vpack.c.b16 %v802, %v800
    %v997 = vpack.c.b16 %v803, %v801
    %v998 = vpack.c.b16 %v806, %v804
    %v999 = vpack.c.b16 %v807, %v805
    %v1000 = vpack.c.b16 %v810, %v808
    %v1001 = vpack.c.b16 %v811, %v809
    %v1002 = vpack.c.b16 %v814, %v812
    %v1003 = vpack.c.b16 %v815, %v813
    %v1004 = vpack.c.b16 %v818, %v816
    %v1005 = vpack.c.b16 %v819, %v817
    %v1006 = vpack.c.b16 %v822, %v820
    %v1007 = vpack.c.b16 %v823, %v821
    %v1008 = vpack.c.b16 %v826, %v824
    %v1009 = vpack.c.b16 %v827, %v825
    %v1010 = vpack.c.b16 %v830, %v828
    %v1011 = vpack.c.b16 %v831, %v829
    %v1012 = vpack.c.b16 %v834, %v832
    %v1013 = vpack.c.b16 %v835, %v833
    %v1014 = vpack.c.b16 %v838, %v836
    %v1015 = vpack.c.b16 %v839, %v837
    %v1016 = vpack.c.b16 %v842, %v840
    %v1017 = vpack.c.b16 %v843, %v841
    %v1018 = vpack.c.b16 %v846, %v844
    %v1019 = vpack.c.b16 %v847, %v845
    %v1020 = vpack.c.b16 %v850, %v848
    %v1021 = vpack.c.b16 %v851, %v849
    %v1022 = vpack.c.b16 %v854, %v852
    %v1023 = vpack.c.b16 %v855, %v853
    %v1024 = vpack.c.b16 %v858, %v856
    %v1025 = vpack.c.b16 %v859, %v857
    %v1026 = vpack.c.b16 %v862, %v860
    %v1027 = vpack.c.b16 %v863, %v861
    %v1028 = vpack.c.b16 %v866, %v864
    %v1029 = vpack.c.b16 %v867, %v865
    %v1030 = vpack.c.b16 %v870, %v868
    %v1031 = vpack.c.b16 %v871, %v869
    %v1032 = vpack.c.b16 %v874, %v872
    %v1033 = vpack.c.b16 %v875, %v873
    %v1034 = vpack.c.b16 %v878, %v876
    %v1035 = vpack.c.b16 %v879, %v877
    %v1036 = vpack.c.b16 %v882, %v880
    %v1037 = vpack.c.b16 %v883, %v881
    %v1038 = vpack.c.b16 %v886, %v884
    %v1039 = vpack.c.b16 %v887, %v885
    %v1040 = vpack.c.b16 %v890, %v888
    %v1041 = vpack.c.b16 %v891, %v889
    %v1042 = vpack.c.b16 %v894, %v892
    %v1043 = vpack.c.b16 %v895, %v893
    %v1044 = vpack.c.b16 %v898, %v896
    %v1045 = vpack.c.b16 %v899, %v897
    %v1046 = vpack.c.b16 %v902, %v900
    %v1047 = vpack.c.b16 %v903, %v901
    %v1048 = vpack.c.b16 %v906, %v904
    %v1049 = vpack.c.b16 %v907, %v905
    %v1050 = vpack.c.b16 %v910, %v908
    %v1051 = vpack.c.b16 %v911, %v909
    %v1052 = vpack.c.b16 %v914, %v912
    %v1053 = vpack.c.b16 %v915, %v913
    %v1054 = vpack.c.b16 %v918, %v916
    %v1055 = vpack.c.b16 %v919, %v917
    %v1056 = vpack.c.b16 %v922, %v920
    %v1057 = vpack.c.b16 %v923, %v921
    %v1058 = vpack.c.b16 %v926, %v924
    %v1059 = vpack.c.b16 %v927, %v925
    %v1060 = vpack.c.b16 %v930, %v928
    %v1061 = vpack.c.b16 %v931, %v929
    %v1062 = vpack.c.b16 %v934, %v932
    %v1063 = vpack.c.b16 %v935, %v933
    %v1064 = vpack.c.b16 %v938, %v936
    %v1065 = vpack.c.b16 %v939, %v937
    %v1066 = vpack.c.b16 %v942, %v940
    %v1067 = vpack.c.b16 %v943, %v941
    %v1068 = vpack.c.b16 %v946, %v944
    %v1069 = vpack.c.b16 %v947, %v945
    %v1070 = vpack.c.b16 %v950, %v948
    %v1071 = vpack.c.b16 %v951, %v949
    %v1072 = vpack.c.b16 %v954, %v952
    %v1073 = vpack.c.b16 %v955, %v953
    %v1074 = vpack.c.b16 %v958, %v956
    %v1075 = vpack.c.b16 %v959, %v957
    %v1076 = vpack.c.b16 %v962, %v960
    %v1077 = vpack.c.b16 %v963, %v961
    %v1078 = vpack.c.b16 %v966, %v964
    %v1079 = vpack.c.b16 %v967, %v965
    %v1080 = vpack.c.b16 %v970, %v968
    %v1081 = vpack.c.b16 %v971, %v969
    %v1082 = vpack.c.b16 %v974, %v972
    %v1083 = vpack.c.b16 %v975, %v973
    %v1084 = vpack.c.b16 %v978, %v976
    %v1085 = vpack.c.b16 %v979, %v977
    %v1086 = vpack.c.b16 %v982, %v980
    %v1087 = vpack.c.b16 %v983, %v981
    %v1088 = vpack.c.b16 %v986, %v984
    %v1089 = vpack.c.b16 %v987, %v985
    %v1090 = vpack.c.b16 %v990, %v988
    %v1091 = vpack.c.b16 %v991, %v989
    %v1092 = vpack.c.b16 %v994, %v992
    %v1093 = vpack.c.b16 %v995, %v993
    %vm1192 = vcmask 130048
    %v1194 = vsel %vm1192, %v542, 0
    %v1197 = vsel %vm1192, %v549, 0
    %v1200 = vsel %vm1192, %v556, 0
    %v1203 = vsel %vm1192, %v563, 0
    %v1206 = vsel %vm1192, %v570, 0
    %v1209 = vsel %vm1192, %v577, 0
    %v1212 = vsel %vm1192, %v584, 0
    %v1215 = vsel %vm1192, %v591, 0
    %1217 = vmatprep.subr.bf16.mxu0 %v1011
    %1218 = vmatpush1.bf16.msra.mxu0 %v1010
    %1219 = vmatprep.subr.bf16.mxu0 %v1009
    %1220 = vmatpush1.bf16.msra.mxu0 %v1008
    %1221 = vmatprep.subr.bf16.mxu0 %v1007
    %1222 = vmatpush1.bf16.msra.mxu0 %v1006
    %1223 = vmatprep.subr.bf16.mxu0 %v1005
    %1224 = vmatpush1.bf16.msra.mxu0 %v1004
    %1225 = vmatprep.subr.bf16.mxu0 %v1003
    %1226 = vmatpush1.bf16.msra.mxu0 %v1002
    %1227 = vmatprep.subr.bf16.mxu0 %v1001
    %1228 = vmatpush1.bf16.msra.mxu0 %v1000
    %1229 = vmatprep.subr.bf16.mxu0 %v999
    %1230 = vmatpush1.bf16.msra.mxu0 %v998
    %1231 = vmatprep.subr.bf16.mxu0 %v997
    %1232 = vmatpush1.bf16.msra.mxu0 %v996
    %1233 = vmatprep.subr.bf16.mxu0 %v1027
    %1234 = vmatpush2.bf16.msra.mxu0 %v1026
    %1235 = vmatprep.subr.bf16.mxu0 %v1025
    %1236 = vmatpush2.bf16.msra.mxu0 %v1024
    %1237 = vmatprep.subr.bf16.mxu0 %v1023
    %1238 = vmatpush2.bf16.msra.mxu0 %v1022
    %1239 = vmatprep.subr.bf16.mxu0 %v1021
    %1240 = vmatpush2.bf16.msra.mxu0 %v1020
    %1241 = vmatprep.subr.bf16.mxu0 %v1019
    %1242 = vmatpush2.bf16.msra.mxu0 %v1018
    %1243 = vmatprep.subr.bf16.mxu0 %v1017
    %1244 = vmatpush2.bf16.msra.mxu0 %v1016
    %1245 = vmatprep.subr.bf16.mxu0 %v1015
    %1246 = vmatpush2.bf16.msra.mxu0 %v1014
    %1247 = vmatprep.subr.bf16.mxu0 %v1013
    %1248 = vmatpush2.bf16.msra.mxu0 %v1012
    %1249 = vmatprep.mubr.bf16.mxu0 %v537
    %1250 = vmatmul.mubr.bf16.gmra.mxu0 %v536
    %v1251 = vpop.f32.mrf.mxu0
    %v1252 = vadd.f32 %v695, %v1251
    %v1253 = vpop.f32.mrf.mxu0
    %v1254 = vadd.f32 %v699, %v1253
    %v1255 = vpop.f32.mrf.mxu0
    %v1256 = vadd.f32 %v695, %v1255
    %v1257 = vpop.f32.mrf.mxu0
    %v1258 = vadd.f32 %v699, %v1257
    %1259 = vmatprep.mubr.bf16.mxu0 %v544
    %1260 = vmatmul.mubr.bf16.gmra.mxu0 %v543
    %v1261 = vpop.f32.mrf.mxu0
    %v1262 = vadd.f32 %v695, %v1261
    %v1263 = vpop.f32.mrf.mxu0
    %v1264 = vadd.f32 %v699, %v1263
    %v1265 = vpop.f32.mrf.mxu0
    %v1266 = vadd.f32 %v695, %v1265
    %v1267 = vpop.f32.mrf.mxu0
    %v1268 = vadd.f32 %v699, %v1267
    %1269 = vmatprep.mubr.bf16.mxu0 %v551
    %1270 = vmatmul.mubr.bf16.gmra.mxu0 %v550
    %v1271 = vpop.f32.mrf.mxu0
    %v1272 = vadd.f32 %v695, %v1271
    %v1273 = vpop.f32.mrf.mxu0
    %v1274 = vadd.f32 %v699, %v1273
    %v1275 = vpop.f32.mrf.mxu0
    %v1276 = vadd.f32 %v695, %v1275
    %v1277 = vpop.f32.mrf.mxu0
    %v1278 = vadd.f32 %v699, %v1277
    %1279 = vmatprep.mubr.bf16.mxu0 %v558
    %1280 = vmatmul.mubr.bf16.gmra.mxu0 %v557
    %v1281 = vpop.f32.mrf.mxu0
    %v1282 = vadd.f32 %v695, %v1281
    %v1283 = vpop.f32.mrf.mxu0
    %v1284 = vadd.f32 %v699, %v1283
    %v1285 = vpop.f32.mrf.mxu0
    %v1286 = vadd.f32 %v695, %v1285
    %v1287 = vpop.f32.mrf.mxu0
    %v1288 = vadd.f32 %v699, %v1287
    %1289 = vmatprep.mubr.bf16.mxu0 %v565
    %1290 = vmatmul.mubr.bf16.gmra.mxu0 %v564
    %v1291 = vpop.f32.mrf.mxu0
    %v1292 = vadd.f32 %v695, %v1291
    %v1293 = vpop.f32.mrf.mxu0
    %v1294 = vadd.f32 %v699, %v1293
    %v1295 = vpop.f32.mrf.mxu0
    %v1296 = vadd.f32 %v695, %v1295
    %v1297 = vpop.f32.mrf.mxu0
    %v1298 = vadd.f32 %v699, %v1297
    %1299 = vmatprep.mubr.bf16.mxu0 %v572
    %1300 = vmatmul.mubr.bf16.gmra.mxu0 %v571
    %v1301 = vpop.f32.mrf.mxu0
    %v1302 = vadd.f32 %v695, %v1301
    %v1303 = vpop.f32.mrf.mxu0
    %v1304 = vadd.f32 %v699, %v1303
    %v1305 = vpop.f32.mrf.mxu0
    %v1306 = vadd.f32 %v695, %v1305
    %v1307 = vpop.f32.mrf.mxu0
    %v1308 = vadd.f32 %v699, %v1307
    %1309 = vmatprep.mubr.bf16.mxu0 %v579
    %1310 = vmatmul.mubr.bf16.gmra.mxu0 %v578
    %v1311 = vpop.f32.mrf.mxu0
    %v1312 = vadd.f32 %v695, %v1311
    %v1313 = vpop.f32.mrf.mxu0
    %v1314 = vadd.f32 %v699, %v1313
    %v1315 = vpop.f32.mrf.mxu0
    %v1316 = vadd.f32 %v695, %v1315
    %v1317 = vpop.f32.mrf.mxu0
    %v1318 = vadd.f32 %v699, %v1317
    %1319 = vmatprep.mubr.bf16.mxu0 %v586
    %1320 = vmatmul.mubr.bf16.gmra.mxu0 %v585
    %v1321 = vpop.f32.mrf.mxu0
    %v1322 = vadd.f32 %v695, %v1321
    %v1323 = vpop.f32.mrf.mxu0
    %v1324 = vadd.f32 %v699, %v1323
    %v1325 = vpop.f32.mrf.mxu0
    %v1326 = vadd.f32 %v695, %v1325
    %v1327 = vpop.f32.mrf.mxu0
    %v1328 = vadd.f32 %v699, %v1327
    %1329 = vdwg.mxu0
    %1330 = vmatprep.subr.bf16.mxu0 %v1043
    %1331 = vmatpush1.bf16.msra.mxu0 %v1042
    %1332 = vmatprep.subr.bf16.mxu0 %v1041
    %1333 = vmatpush1.bf16.msra.mxu0 %v1040
    %1334 = vmatprep.subr.bf16.mxu0 %v1039
    %1335 = vmatpush1.bf16.msra.mxu0 %v1038
    %1336 = vmatprep.subr.bf16.mxu0 %v1037
    %1337 = vmatpush1.bf16.msra.mxu0 %v1036
    %1338 = vmatprep.subr.bf16.mxu0 %v1035
    %1339 = vmatpush1.bf16.msra.mxu0 %v1034
    %1340 = vmatprep.subr.bf16.mxu0 %v1033
    %1341 = vmatpush1.bf16.msra.mxu0 %v1032
    %1342 = vmatprep.subr.bf16.mxu0 %v1031
    %1343 = vmatpush1.bf16.msra.mxu0 %v1030
    %1344 = vmatprep.subr.bf16.mxu0 %v1029
    %1345 = vmatpush1.bf16.msra.mxu0 %v1028
    %1346 = vmatprep.subr.bf16.mxu0 %v1059
    %1347 = vmatpush2.bf16.msra.mxu0 %v1058
    %1348 = vmatprep.subr.bf16.mxu0 %v1057
    %1349 = vmatpush2.bf16.msra.mxu0 %v1056
    %1350 = vmatprep.subr.bf16.mxu0 %v1055
    %1351 = vmatpush2.bf16.msra.mxu0 %v1054
    %1352 = vmatprep.subr.bf16.mxu0 %v1053
    %1353 = vmatpush2.bf16.msra.mxu0 %v1052
    %1354 = vmatprep.subr.bf16.mxu0 %v1051
    %1355 = vmatpush2.bf16.msra.mxu0 %v1050
    %1356 = vmatprep.subr.bf16.mxu0 %v1049
    %1357 = vmatpush2.bf16.msra.mxu0 %v1048
    %1358 = vmatprep.subr.bf16.mxu0 %v1047
    %1359 = vmatpush2.bf16.msra.mxu0 %v1046
    %1360 = vmatprep.subr.bf16.mxu0 %v1045
    %1361 = vmatpush2.bf16.msra.mxu0 %v1044
    %1362 = vmatprep.mubr.bf16.mxu0 %v539
    %1363 = vmatmul.mubr.bf16.gmra.mxu0 %v538
    %v1364 = vpop.f32.mrf.mxu0
    %v1365 = vadd.f32 %v1252, %v1364
    %v1366 = vpop.f32.mrf.mxu0
    %v1367 = vadd.f32 %v1254, %v1366
    %v1368 = vpop.f32.mrf.mxu0
    %v1369 = vadd.f32 %v1256, %v1368
    %v1370 = vpop.f32.mrf.mxu0
    %v1371 = vadd.f32 %v1258, %v1370
    %1372 = vmatprep.mubr.bf16.mxu0 %v546
    %1373 = vmatmul.mubr.bf16.gmra.mxu0 %v545
    %v1374 = vpop.f32.mrf.mxu0
    %v1375 = vadd.f32 %v1262, %v1374
    %v1376 = vpop.f32.mrf.mxu0
    %v1377 = vadd.f32 %v1264, %v1376
    %v1378 = vpop.f32.mrf.mxu0
    %v1379 = vadd.f32 %v1266, %v1378
    %v1380 = vpop.f32.mrf.mxu0
    %v1381 = vadd.f32 %v1268, %v1380
    %1382 = vmatprep.mubr.bf16.mxu0 %v553
    %1383 = vmatmul.mubr.bf16.gmra.mxu0 %v552
    %v1384 = vpop.f32.mrf.mxu0
    %v1385 = vadd.f32 %v1272, %v1384
    %v1386 = vpop.f32.mrf.mxu0
    %v1387 = vadd.f32 %v1274, %v1386
    %v1388 = vpop.f32.mrf.mxu0
    %v1389 = vadd.f32 %v1276, %v1388
    %v1390 = vpop.f32.mrf.mxu0
    %v1391 = vadd.f32 %v1278, %v1390
    %1392 = vmatprep.mubr.bf16.mxu0 %v560
    %1393 = vmatmul.mubr.bf16.gmra.mxu0 %v559
    %v1394 = vpop.f32.mrf.mxu0
    %v1395 = vadd.f32 %v1282, %v1394
    %v1396 = vpop.f32.mrf.mxu0
    %v1397 = vadd.f32 %v1284, %v1396
    %v1398 = vpop.f32.mrf.mxu0
    %v1399 = vadd.f32 %v1286, %v1398
    %v1400 = vpop.f32.mrf.mxu0
    %v1401 = vadd.f32 %v1288, %v1400
    %1402 = vmatprep.mubr.bf16.mxu0 %v567
    %1403 = vmatmul.mubr.bf16.gmra.mxu0 %v566
    %v1404 = vpop.f32.mrf.mxu0
    %v1405 = vadd.f32 %v1292, %v1404
    %v1406 = vpop.f32.mrf.mxu0
    %v1407 = vadd.f32 %v1294, %v1406
    %v1408 = vpop.f32.mrf.mxu0
    %v1409 = vadd.f32 %v1296, %v1408
    %v1410 = vpop.f32.mrf.mxu0
    %v1411 = vadd.f32 %v1298, %v1410
    %1412 = vmatprep.mubr.bf16.mxu0 %v574
    %1413 = vmatmul.mubr.bf16.gmra.mxu0 %v573
    %v1414 = vpop.f32.mrf.mxu0
    %v1415 = vadd.f32 %v1302, %v1414
    %v1416 = vpop.f32.mrf.mxu0
    %v1417 = vadd.f32 %v1304, %v1416
    %v1418 = vpop.f32.mrf.mxu0
    %v1419 = vadd.f32 %v1306, %v1418
    %v1420 = vpop.f32.mrf.mxu0
    %v1421 = vadd.f32 %v1308, %v1420
    %1422 = vmatprep.mubr.bf16.mxu0 %v581
    %1423 = vmatmul.mubr.bf16.gmra.mxu0 %v580
    %v1424 = vpop.f32.mrf.mxu0
    %v1425 = vadd.f32 %v1312, %v1424
    %v1426 = vpop.f32.mrf.mxu0
    %v1427 = vadd.f32 %v1314, %v1426
    %v1428 = vpop.f32.mrf.mxu0
    %v1429 = vadd.f32 %v1316, %v1428
    %v1430 = vpop.f32.mrf.mxu0
    %v1431 = vadd.f32 %v1318, %v1430
    %1432 = vmatprep.mubr.bf16.mxu0 %v588
    %1433 = vmatmul.mubr.bf16.gmra.mxu0 %v587
    %v1434 = vpop.f32.mrf.mxu0
    %v1435 = vadd.f32 %v1322, %v1434
    %v1436 = vpop.f32.mrf.mxu0
    %v1437 = vadd.f32 %v1324, %v1436
    %v1438 = vpop.f32.mrf.mxu0
    %v1439 = vadd.f32 %v1326, %v1438
    %v1440 = vpop.f32.mrf.mxu0
    %v1441 = vadd.f32 %v1328, %v1440
    %1442 = vdwg.mxu0
    %1443 = vmatprep.subr.bf16.mxu0 %v1075
    %1444 = vmatpush1.bf16.msra.mxu0 %v1074
    %1445 = vmatprep.subr.bf16.mxu0 %v1073
    %1446 = vmatpush1.bf16.msra.mxu0 %v1072
    %1447 = vmatprep.subr.bf16.mxu0 %v1071
    %1448 = vmatpush1.bf16.msra.mxu0 %v1070
    %1449 = vmatprep.subr.bf16.mxu0 %v1069
    %1450 = vmatpush1.bf16.msra.mxu0 %v1068
    %1451 = vmatprep.subr.bf16.mxu0 %v1067
    %1452 = vmatpush1.bf16.msra.mxu0 %v1066
    %1453 = vmatprep.subr.bf16.mxu0 %v1065
    %1454 = vmatpush1.bf16.msra.mxu0 %v1064
    %1455 = vmatprep.subr.bf16.mxu0 %v1063
    %1456 = vmatpush1.bf16.msra.mxu0 %v1062
    %1457 = vmatprep.subr.bf16.mxu0 %v1061
    %1458 = vmatpush1.bf16.msra.mxu0 %v1060
    %1459 = vmatprep.subr.bf16.mxu0 %v1091
    %1460 = vmatpush2.bf16.msra.mxu0 %v1090
    %1461 = vmatprep.subr.bf16.mxu0 %v1089
    %1462 = vmatpush2.bf16.msra.mxu0 %v1088
    %1463 = vmatprep.subr.bf16.mxu0 %v1087
    %1464 = vmatpush2.bf16.msra.mxu0 %v1086
    %1465 = vmatprep.subr.bf16.mxu0 %v1085
    %1466 = vmatpush2.bf16.msra.mxu0 %v1084
    %1467 = vmatprep.subr.bf16.mxu0 %v1083
    %1468 = vmatpush2.bf16.msra.mxu0 %v1082
    %1469 = vmatprep.subr.bf16.mxu0 %v1081
    %1470 = vmatpush2.bf16.msra.mxu0 %v1080
    %1471 = vmatprep.subr.bf16.mxu0 %v1079
    %1472 = vmatpush2.bf16.msra.mxu0 %v1078
    %1473 = vmatprep.subr.bf16.mxu0 %v1077
    %1474 = vmatpush2.bf16.msra.mxu0 %v1076
    %1475 = vmatprep.mubr.bf16.mxu0 %v541
    %1476 = vmatmul.mubr.bf16.gmra.mxu0 %v540
    %v1477 = vpop.f32.mrf.mxu0
    %v1478 = vadd.f32 %v1365, %v1477
    %v1479 = vpop.f32.mrf.mxu0
    %v1480 = vadd.f32 %v1367, %v1479
    %v1481 = vpop.f32.mrf.mxu0
    %v1482 = vadd.f32 %v1369, %v1481
    %v1483 = vpop.f32.mrf.mxu0
    %v1484 = vadd.f32 %v1371, %v1483
    %1485 = vmatprep.mubr.bf16.mxu0 %v548
    %1486 = vmatmul.mubr.bf16.gmra.mxu0 %v547
    %v1487 = vpop.f32.mrf.mxu0
    %v1488 = vadd.f32 %v1375, %v1487
    %v1489 = vpop.f32.mrf.mxu0
    %v1490 = vadd.f32 %v1377, %v1489
    %v1491 = vpop.f32.mrf.mxu0
    %v1492 = vadd.f32 %v1379, %v1491
    %v1493 = vpop.f32.mrf.mxu0
    %v1494 = vadd.f32 %v1381, %v1493
    %1495 = vmatprep.mubr.bf16.mxu0 %v555
    %1496 = vmatmul.mubr.bf16.gmra.mxu0 %v554
    %v1497 = vpop.f32.mrf.mxu0
    %v1498 = vadd.f32 %v1385, %v1497
    %v1499 = vpop.f32.mrf.mxu0
    %v1500 = vadd.f32 %v1387, %v1499
    %v1501 = vpop.f32.mrf.mxu0
    %v1502 = vadd.f32 %v1389, %v1501
    %v1503 = vpop.f32.mrf.mxu0
    %v1504 = vadd.f32 %v1391, %v1503
    %1505 = vmatprep.mubr.bf16.mxu0 %v562
    %1506 = vmatmul.mubr.bf16.gmra.mxu0 %v561
    %v1507 = vpop.f32.mrf.mxu0
    %v1508 = vadd.f32 %v1395, %v1507
    %v1509 = vpop.f32.mrf.mxu0
    %v1510 = vadd.f32 %v1397, %v1509
    %v1511 = vpop.f32.mrf.mxu0
    %v1512 = vadd.f32 %v1399, %v1511
    %v1513 = vpop.f32.mrf.mxu0
    %v1514 = vadd.f32 %v1401, %v1513
    %1515 = vmatprep.mubr.bf16.mxu0 %v569
    %1516 = vmatmul.mubr.bf16.gmra.mxu0 %v568
    %v1517 = vpop.f32.mrf.mxu0
    %v1518 = vadd.f32 %v1405, %v1517
    %v1519 = vpop.f32.mrf.mxu0
    %v1520 = vadd.f32 %v1407, %v1519
    %v1521 = vpop.f32.mrf.mxu0
    %v1522 = vadd.f32 %v1409, %v1521
    %v1523 = vpop.f32.mrf.mxu0
    %v1524 = vadd.f32 %v1411, %v1523
    %1525 = vmatprep.mubr.bf16.mxu0 %v576
    %1526 = vmatmul.mubr.bf16.gmra.mxu0 %v575
    %v1527 = vpop.f32.mrf.mxu0
    %v1528 = vadd.f32 %v1415, %v1527
    %v1529 = vpop.f32.mrf.mxu0
    %v1530 = vadd.f32 %v1417, %v1529
    %v1531 = vpop.f32.mrf.mxu0
    %v1532 = vadd.f32 %v1419, %v1531
    %v1533 = vpop.f32.mrf.mxu0
    %v1534 = vadd.f32 %v1421, %v1533
    %1535 = vmatprep.mubr.bf16.mxu0 %v583
    %1536 = vmatmul.mubr.bf16.gmra.mxu0 %v582
    %v1537 = vpop.f32.mrf.mxu0
    %v1538 = vadd.f32 %v1425, %v1537
    %v1539 = vpop.f32.mrf.mxu0
    %v1540 = vadd.f32 %v1427, %v1539
    %v1541 = vpop.f32.mrf.mxu0
    %v1542 = vadd.f32 %v1429, %v1541
    %v1543 = vpop.f32.mrf.mxu0
    %v1544 = vadd.f32 %v1431, %v1543
    %1545 = vmatprep.mubr.bf16.mxu0 %v590
    %1546 = vmatmul.mubr.bf16.gmra.mxu0 %v589
    %v1547 = vpop.f32.mrf.mxu0
    %v1548 = vadd.f32 %v1435, %v1547
    %v1549 = vpop.f32.mrf.mxu0
    %v1550 = vadd.f32 %v1437, %v1549
    %v1551 = vpop.f32.mrf.mxu0
    %v1552 = vadd.f32 %v1439, %v1551
    %v1553 = vpop.f32.mrf.mxu0
    %v1554 = vadd.f32 %v1441, %v1553
    %1555 = vdwg.mxu0
    %1556 = vmatprep.subr.bf16.mxu0 0
    %1557 = vmatpush1.bf16.msra.mxu0 0
    %1558 = vmatprep.subr.bf16.mxu0 0
    %1559 = vmatpush1.bf16.msra.mxu0 0
    %1560 = vmatprep.subr.bf16.mxu0 0
    %1561 = vmatpush1.bf16.msra.mxu0 0
    %1562 = vmatprep.subr.bf16.mxu0 0
    %1563 = vmatpush1.bf16.msra.mxu0 0
    %1564 = vmatprep.subr.bf16.mxu0 0
    %1565 = vmatpush1.bf16.msra.mxu0 0
    %1566 = vmatprep.subr.bf16.mxu0 0
    %1567 = vmatpush1.bf16.msra.mxu0 0
    %1568 = vmatprep.subr.bf16.mxu0 0
    %1569 = vmatpush1.bf16.msra.mxu0 0
    %1570 = vmatprep.subr.bf16.mxu0 %v1093
    %1571 = vmatpush1.bf16.msra.mxu0 %v1092
    %1572 = vmatprep.subr.bf16.mxu0 0
    %1573 = vmatpush2.bf16.msra.mxu0 0
    %1574 = vmatprep.subr.bf16.mxu0 0
    %1575 = vmatpush2.bf16.msra.mxu0 0
    %1576 = vmatprep.subr.bf16.mxu0 0
    %1577 = vmatpush2.bf16.msra.mxu0 0
    %1578 = vmatprep.subr.bf16.mxu0 0
    %1579 = vmatpush2.bf16.msra.mxu0 0
    %1580 = vmatprep.subr.bf16.mxu0 0
    %1581 = vmatpush2.bf16.msra.mxu0 0
    %1582 = vmatprep.subr.bf16.mxu0 0
    %1583 = vmatpush2.bf16.msra.mxu0 0
    %1584 = vmatprep.subr.bf16.mxu0 0
    %1585 = vmatpush2.bf16.msra.mxu0 0
    %1586 = vmatprep.subr.bf16.mxu0 0
    %1587 = vmatpush2.bf16.msra.mxu0 0
    %1588 = vmatprep.mubr.bf16.mxu0 0
    %1589 = vmatmul.mubr.bf16.gmra.mxu0 %v1194
    %v1590 = vpop.f32.mrf.mxu0
    %v1591 = vadd.f32 %v1478, %v1590
    %v1592 = vpop.f32.mrf.mxu0
    %v1593 = vadd.f32 %v1480, %v1592
    %v1594 = vpop.f32.mrf.mxu0
    %v1595 = vadd.f32 %v1482, %v1594
    %v1596 = vpop.f32.mrf.mxu0
    %v1597 = vadd.f32 %v1484, %v1596
    %1598 = vmatprep.mubr.bf16.mxu0 0
    %1599 = vmatmul.mubr.bf16.gmra.mxu0 %v1197
    %v1600 = vpop.f32.mrf.mxu0
    %v1601 = vadd.f32 %v1488, %v1600
    %v1602 = vpop.f32.mrf.mxu0
    %v1603 = vadd.f32 %v1490, %v1602
    %v1604 = vpop.f32.mrf.mxu0
    %v1605 = vadd.f32 %v1492, %v1604
    %v1606 = vpop.f32.mrf.mxu0
    %v1607 = vadd.f32 %v1494, %v1606
    %1608 = vmatprep.mubr.bf16.mxu0 0
    %1609 = vmatmul.mubr.bf16.gmra.mxu0 %v1200
    %v1610 = vpop.f32.mrf.mxu0
    %v1611 = vadd.f32 %v1498, %v1610
    %v1612 = vpop.f32.mrf.mxu0
    %v1613 = vadd.f32 %v1500, %v1612
    %v1614 = vpop.f32.mrf.mxu0
    %v1615 = vadd.f32 %v1502, %v1614
    %v1616 = vpop.f32.mrf.mxu0
    %v1617 = vadd.f32 %v1504, %v1616
    %1618 = vmatprep.mubr.bf16.mxu0 0
    %1619 = vmatmul.mubr.bf16.gmra.mxu0 %v1203
    %v1620 = vpop.f32.mrf.mxu0
    %v1621 = vadd.f32 %v1508, %v1620
    %v1622 = vpop.f32.mrf.mxu0
    %v1623 = vadd.f32 %v1510, %v1622
    %v1624 = vpop.f32.mrf.mxu0
    %v1625 = vadd.f32 %v1512, %v1624
    %v1626 = vpop.f32.mrf.mxu0
    %v1627 = vadd.f32 %v1514, %v1626
    %1628 = vmatprep.mubr.bf16.mxu0 0
    %1629 = vmatmul.mubr.bf16.gmra.mxu0 %v1206
    %v1630 = vpop.f32.mrf.mxu0
    %v1631 = vadd.f32 %v1518, %v1630
    %v1632 = vpop.f32.mrf.mxu0
    %v1633 = vadd.f32 %v1520, %v1632
    %v1634 = vpop.f32.mrf.mxu0
    %v1635 = vadd.f32 %v1522, %v1634
    %v1636 = vpop.f32.mrf.mxu0
    %v1637 = vadd.f32 %v1524, %v1636
    %1638 = vmatprep.mubr.bf16.mxu0 0
    %1639 = vmatmul.mubr.bf16.gmra.mxu0 %v1209
    %v1640 = vpop.f32.mrf.mxu0
    %v1641 = vadd.f32 %v1528, %v1640
    %v1642 = vpop.f32.mrf.mxu0
    %v1643 = vadd.f32 %v1530, %v1642
    %v1644 = vpop.f32.mrf.mxu0
    %v1645 = vadd.f32 %v1532, %v1644
    %v1646 = vpop.f32.mrf.mxu0
    %v1647 = vadd.f32 %v1534, %v1646
    %1648 = vmatprep.mubr.bf16.mxu0 0
    %1649 = vmatmul.mubr.bf16.gmra.mxu0 %v1212
    %v1650 = vpop.f32.mrf.mxu0
    %v1651 = vadd.f32 %v1538, %v1650
    %v1652 = vpop.f32.mrf.mxu0
    %v1653 = vadd.f32 %v1540, %v1652
    %v1654 = vpop.f32.mrf.mxu0
    %v1655 = vadd.f32 %v1542, %v1654
    %v1656 = vpop.f32.mrf.mxu0
    %v1657 = vadd.f32 %v1544, %v1656
    %1658 = vmatprep.mubr.bf16.mxu0 0
    %1659 = vmatmul.mubr.bf16.gmra.mxu0 %v1215
    %v1660 = vpop.f32.mrf.mxu0
    %v1661 = vadd.f32 %v1548, %v1660
    %v1662 = vpop.f32.mrf.mxu0
    %v1663 = vadd.f32 %v1550, %v1662
    %v1664 = vpop.f32.mrf.mxu0
    %v1665 = vadd.f32 %v1552, %v1664
    %v1666 = vpop.f32.mrf.mxu0
    %v1667 = vadd.f32 %v1554, %v1666
    %1668 = vdwg.mxu0
    %v1669 = vmax.f32 %v1591, 0.0
    %v1670 = vmax.f32 %v1593, 0.0
    %v1671 = vmax.f32 %v1595, 0.0
    %v1672 = vmax.f32 %v1597, 0.0
    %v1673 = vmax.f32 %v1601, 0.0
    %v1674 = vmax.f32 %v1603, 0.0
    %v1675 = vmax.f32 %v1605, 0.0
    %v1676 = vmax.f32 %v1607, 0.0
    %v1677 = vmax.f32 %v1611, 0.0
    %v1678 = vmax.f32 %v1613, 0.0
    %v1679 = vmax.f32 %v1615, 0.0
    %v1680 = vmax.f32 %v1617, 0.0
    %v1681 = vmax.f32 %v1621, 0.0
    %v1682 = vmax.f32 %v1623, 0.0
    %v1683 = vmax.f32 %v1625, 0.0
    %v1684 = vmax.f32 %v1627, 0.0
    %v1685 = vmax.f32 %v1631, 0.0
    %v1686 = vmax.f32 %v1633, 0.0
    %v1687 = vmax.f32 %v1635, 0.0
    %v1688 = vmax.f32 %v1637, 0.0
    %v1689 = vmax.f32 %v1641, 0.0
    %v1690 = vmax.f32 %v1643, 0.0
    %v1691 = vmax.f32 %v1645, 0.0
    %v1692 = vmax.f32 %v1647, 0.0
    %v1693 = vmax.f32 %v1651, 0.0
    %v1694 = vmax.f32 %v1653, 0.0
    %v1695 = vmax.f32 %v1655, 0.0
    %v1696 = vmax.f32 %v1657, 0.0
    %v1697 = vmax.f32 %v1661, 0.0
    %v1698 = vmax.f32 %v1663, 0.0
    %v1699 = vmax.f32 %v1665, 0.0
    %v1700 = vmax.f32 %v1667, 0.0
    %v1701 = vpack.c.bf16 %v1671, %v1669
    %v1702 = vpack.c.bf16 %v1672, %v1670
    %v1703 = vpack.c.bf16 %v1675, %v1673
    %v1704 = vpack.c.bf16 %v1676, %v1674
    %v1705 = vpack.c.bf16 %v1679, %v1677
    %v1706 = vpack.c.bf16 %v1680, %v1678
    %v1707 = vpack.c.bf16 %v1683, %v1681
    %v1708 = vpack.c.bf16 %v1684, %v1682
    %v1709 = vpack.c.bf16 %v1687, %v1685
    %v1710 = vpack.c.bf16 %v1688, %v1686
    %v1711 = vpack.c.bf16 %v1691, %v1689
    %v1712 = vpack.c.bf16 %v1692, %v1690
    %v1713 = vpack.c.bf16 %v1695, %v1693
    %v1714 = vpack.c.bf16 %v1696, %v1694
    %v1715 = vpack.c.bf16 %v1699, %v1697
    %v1716 = vpack.c.bf16 %v1700, %v1698
    %v1717 = vld [vmem:[#allocation5] sm:$0xf]
    %v1718 = vld [vmem:[#allocation5 + $0x4] sm:$0xf]
    %v1719 = vld [vmem:[#allocation5 + $0x8] sm:$0xf]
    %v1720 = vld [vmem:[#allocation5 + $0xc] sm:$0xf]
    %v1721 = vld [vmem:[#allocation5 + $0x10] sm:$0xf]
    %v1722 = vld [vmem:[#allocation5 + $0x14] sm:$0xf]
    %v1723 = vld [vmem:[#allocation5 + $0x18] sm:$0xf]
    %v1724 = vld [vmem:[#allocation5 + $0x1c] sm:$0xf]
    %v1725 = vld [vmem:[#allocation5 + $0x20] sm:$0xf]
    %v1726 = vld [vmem:[#allocation5 + $0x24] sm:$0xf]
    %v1727 = vld [vmem:[#allocation5 + $0x28] sm:$0xf]
    %v1728 = vld [vmem:[#allocation5 + $0x2c] sm:$0xf]
    %v1729 = vld [vmem:[#allocation5 + $0x30] sm:$0xf]
    %v1730 = vld [vmem:[#allocation5 + $0x34] sm:$0xf]
    %v1731 = vld [vmem:[#allocation5 + $0x38] sm:$0xf]
    %v1732 = vld [vmem:[#allocation5 + $0x3c] sm:$0xf]
    %v1733 = vld [vmem:[#allocation5 + $0x40] sm:$0xf]
    %v1734 = vld [vmem:[#allocation5 + $0x44] sm:$0xf]
    %v1735 = vld [vmem:[#allocation5 + $0x48] sm:$0xf]
    %v1736 = vld [vmem:[#allocation5 + $0x4c] sm:$0xf]
    %v1737 = vld [vmem:[#allocation5 + $0x50] sm:$0xf]
    %v1738 = vld [vmem:[#allocation5 + $0x54] sm:$0xf]
    %v1739 = vld [vmem:[#allocation5 + $0x58] sm:$0xf]
    %v1740 = vld [vmem:[#allocation5 + $0x5c] sm:$0xf]
    %v1741 = vld [vmem:[#allocation5 + $0x60] sm:$0xf]
    %v1742 = vld [vmem:[#allocation5 + $0x64] sm:$0xf]
    %v1743 = vld [vmem:[#allocation5 + $0x68] sm:$0xf]
    %v1744 = vld [vmem:[#allocation5 + $0x6c] sm:$0xf]
    %v1745 = vld [vmem:[#allocation5 + $0x70] sm:$0xf]
    %v1746 = vld [vmem:[#allocation5 + $0x74] sm:$0xf]
    %v1747 = vld [vmem:[#allocation5 + $0x78] sm:$0xf]
    %v1748 = vld [vmem:[#allocation5 + $0x7c] sm:$0xf]
    %v1749 = vld [vmem:[%s4] sm:$0x1]
    %v1751 = vlaneseq
    %v1752 = vshrl.u32 %v1751, 7
    %v1753 = vsub.s32 0, %v1752
    %v1754 = vrot.slane %v1749, %v1753
    %v1788 = vunpack.c.l.b16 %v1717
    %v1789 = vunpack.c.l.b16 %v1718
    %v1790 = vunpack.c.l.b16 %v1719
    %v1791 = vunpack.c.l.b16 %v1720
    %v1792 = vunpack.c.l.b16 %v1721
    %v1793 = vunpack.c.l.b16 %v1722
    %v1794 = vunpack.c.l.b16 %v1723
    %v1795 = vunpack.c.l.b16 %v1724
    %v1796 = vunpack.c.l.b16 %v1725
    %v1797 = vunpack.c.l.b16 %v1726
    %v1798 = vunpack.c.l.b16 %v1727
    %v1799 = vunpack.c.l.b16 %v1728
    %v1800 = vunpack.c.l.b16 %v1729
    %v1801 = vunpack.c.l.b16 %v1730
    %v1802 = vunpack.c.l.b16 %v1731
    %v1803 = vunpack.c.l.b16 %v1732
    %v1804 = vunpack.c.l.b16 %v1733
    %v1805 = vunpack.c.l.b16 %v1734
    %v1806 = vunpack.c.l.b16 %v1735
    %v1807 = vunpack.c.l.b16 %v1736
    %v1808 = vunpack.c.l.b16 %v1737
    %v1809 = vunpack.c.l.b16 %v1738
    %v1810 = vunpack.c.l.b16 %v1739
    %v1811 = vunpack.c.l.b16 %v1740
    %v1812 = vunpack.c.l.b16 %v1741
    %v1813 = vunpack.c.l.b16 %v1742
    %v1814 = vunpack.c.l.b16 %v1743
    %v1815 = vunpack.c.l.b16 %v1744
    %v1816 = vunpack.c.l.b16 %v1745
    %v1817 = vunpack.c.l.b16 %v1746
    %v1818 = vunpack.c.l.b16 %v1747
    %v1819 = vunpack.c.l.b16 %v1748
    %v1820 = vpack.c.b16 %v1789, %v1788
    %v1821 = vpack.c.b16 %v1791, %v1790
    %v1822 = vpack.c.b16 %v1793, %v1792
    %v1823 = vpack.c.b16 %v1795, %v1794
    %v1824 = vpack.c.b16 %v1797, %v1796
    %v1825 = vpack.c.b16 %v1799, %v1798
    %v1826 = vpack.c.b16 %v1801, %v1800
    %v1827 = vpack.c.b16 %v1803, %v1802
    %v1828 = vpack.c.b16 %v1805, %v1804
    %v1829 = vpack.c.b16 %v1807, %v1806
    %v1830 = vpack.c.b16 %v1809, %v1808
    %v1831 = vpack.c.b16 %v1811, %v1810
    %v1832 = vpack.c.b16 %v1813, %v1812
    %v1833 = vpack.c.b16 %v1815, %v1814
    %v1834 = vpack.c.b16 %v1817, %v1816
    %v1835 = vpack.c.b16 %v1819, %v1818
    %1852 = vmatprep.subr.bf16.mxu0 0
    %1853 = vmatpush1.bf16.msra.mxu0 %v1827
    %1854 = vmatprep.subr.bf16.mxu0 0
    %1855 = vmatpush1.bf16.msra.mxu0 %v1826
    %1856 = vmatprep.subr.bf16.mxu0 0
    %1857 = vmatpush1.bf16.msra.mxu0 %v1825
    %1858 = vmatprep.subr.bf16.mxu0 0
    %1859 = vmatpush1.bf16.msra.mxu0 %v1824
    %1860 = vmatprep.subr.bf16.mxu0 0
    %1861 = vmatpush1.bf16.msra.mxu0 %v1823
    %1862 = vmatprep.subr.bf16.mxu0 0
    %1863 = vmatpush1.bf16.msra.mxu0 %v1822
    %1864 = vmatprep.subr.bf16.mxu0 0
    %1865 = vmatpush1.bf16.msra.mxu0 %v1821
    %1866 = vmatprep.subr.bf16.mxu0 0
    %1867 = vmatpush1.bf16.msra.mxu0 %v1820
    %1868 = vmatprep.subr.bf16.mxu0 0
    %1869 = vmatpush2.bf16.msra.mxu0 %v1835
    %1870 = vmatprep.subr.bf16.mxu0 0
    %1871 = vmatpush2.bf16.msra.mxu0 %v1834
    %1872 = vmatprep.subr.bf16.mxu0 0
    %1873 = vmatpush2.bf16.msra.mxu0 %v1833
    %1874 = vmatprep.subr.bf16.mxu0 0
    %1875 = vmatpush2.bf16.msra.mxu0 %v1832
    %1876 = vmatprep.subr.bf16.mxu0 0
    %1877 = vmatpush2.bf16.msra.mxu0 %v1831
    %1878 = vmatprep.subr.bf16.mxu0 0
    %1879 = vmatpush2.bf16.msra.mxu0 %v1830
    %1880 = vmatprep.subr.bf16.mxu0 0
    %1881 = vmatpush2.bf16.msra.mxu0 %v1829
    %1882 = vmatprep.subr.bf16.mxu0 0
    %1883 = vmatpush2.bf16.msra.mxu0 %v1828
    %1884 = vmatprep.mubr.bf16.mxu0 %v1702
    %1885 = vmatmul.mubr.bf16.gmra.mxu0 %v1701
    %v1886 = vpop.f32.mrf.mxu0
    %v1887 = vadd.f32 %v1754, %v1886
    %v1888 = vpop.f32.mrf.mxu0
    %v1889 = vpop.f32.mrf.mxu0
    %v1890 = vadd.f32 %v1754, %v1889
    %v1891 = vpop.f32.mrf.mxu0
    %1892 = vmatprep.mubr.bf16.mxu0 %v1704
    %1893 = vmatmul.mubr.bf16.gmra.mxu0 %v1703
    %v1894 = vpop.f32.mrf.mxu0
    %v1895 = vadd.f32 %v1754, %v1894
    %v1896 = vpop.f32.mrf.mxu0
    %v1897 = vpop.f32.mrf.mxu0
    %v1898 = vadd.f32 %v1754, %v1897
    %v1899 = vpop.f32.mrf.mxu0
    %1900 = vmatprep.mubr.bf16.mxu0 %v1706
    %1901 = vmatmul.mubr.bf16.gmra.mxu0 %v1705
    %v1902 = vpop.f32.mrf.mxu0
    %v1903 = vadd.f32 %v1754, %v1902
    %v1904 = vpop.f32.mrf.mxu0
    %v1905 = vpop.f32.mrf.mxu0
    %v1906 = vadd.f32 %v1754, %v1905
    %v1907 = vpop.f32.mrf.mxu0
    %1908 = vmatprep.mubr.bf16.mxu0 %v1708
    %1909 = vmatmul.mubr.bf16.gmra.mxu0 %v1707
    %v1910 = vpop.f32.mrf.mxu0
    %v1911 = vadd.f32 %v1754, %v1910
    %v1912 = vpop.f32.mrf.mxu0
    %v1913 = vpop.f32.mrf.mxu0
    %v1914 = vadd.f32 %v1754, %v1913
    %v1915 = vpop.f32.mrf.mxu0
    %1916 = vmatprep.mubr.bf16.mxu0 %v1710
    %1917 = vmatmul.mubr.bf16.gmra.mxu0 %v1709
    %v1918 = vpop.f32.mrf.mxu0
    %v1919 = vadd.f32 %v1754, %v1918
    %v1920 = vpop.f32.mrf.mxu0
    %v1921 = vpop.f32.mrf.mxu0
    %v1922 = vadd.f32 %v1754, %v1921
    %v1923 = vpop.f32.mrf.mxu0
    %1924 = vmatprep.mubr.bf16.mxu0 %v1712
    %1925 = vmatmul.mubr.bf16.gmra.mxu0 %v1711
    %v1926 = vpop.f32.mrf.mxu0
    %v1927 = vadd.f32 %v1754, %v1926
    %v1928 = vpop.f32.mrf.mxu0
    %v1929 = vpop.f32.mrf.mxu0
    %v1930 = vadd.f32 %v1754, %v1929
    %v1931 = vpop.f32.mrf.mxu0
    %1932 = vmatprep.mubr.bf16.mxu0 %v1714
    %1933 = vmatmul.mubr.bf16.gmra.mxu0 %v1713
    %v1934 = vpop.f32.mrf.mxu0
    %v1935 = vadd.f32 %v1754, %v1934
    %v1936 = vpop.f32.mrf.mxu0
    %v1937 = vpop.f32.mrf.mxu0
    %v1938 = vadd.f32 %v1754, %v1937
    %v1939 = vpop.f32.mrf.mxu0
    %1940 = vmatprep.mubr.bf16.mxu0 %v1716
    %1941 = vmatmul.mubr.bf16.gmra.mxu0 %v1715
    %v1942 = vpop.f32.mrf.mxu0
    %v1943 = vadd.f32 %v1754, %v1942
    %v1944 = vpop.f32.mrf.mxu0
    %v1945 = vpop.f32.mrf.mxu0
    %v1946 = vadd.f32 %v1754, %v1945
    %v1947 = vpop.f32.mrf.mxu0
    %1948 = vdwg.mxu0
    %v1949 = vmax.f32 %v1887, 0.0
    %v1950 = vmax.f32 %v1890, 0.0
    %v1951 = vmax.f32 %v1895, 0.0
    %v1952 = vmax.f32 %v1898, 0.0
    %v1953 = vmax.f32 %v1903, 0.0
    %v1954 = vmax.f32 %v1906, 0.0
    %v1955 = vmax.f32 %v1911, 0.0
    %v1956 = vmax.f32 %v1914, 0.0
    %v1957 = vmax.f32 %v1919, 0.0
    %v1958 = vmax.f32 %v1922, 0.0
    %v1959 = vmax.f32 %v1927, 0.0
    %v1960 = vmax.f32 %v1930, 0.0
    %v1961 = vmax.f32 %v1935, 0.0
    %v1962 = vmax.f32 %v1938, 0.0
    %v1963 = vmax.f32 %v1943, 0.0
    %v1964 = vmax.f32 %v1946, 0.0
    %v1965 = vpack.c.bf16 %v1950, %v1949
    %v1966 = vpack.c.bf16 %v1952, %v1951
    %v1967 = vpack.c.bf16 %v1954, %v1953
    %v1968 = vpack.c.bf16 %v1956, %v1955
    %v1969 = vpack.c.bf16 %v1958, %v1957
    %v1970 = vpack.c.bf16 %v1960, %v1959
    %v1971 = vpack.c.bf16 %v1962, %v1961
    %v1972 = vpack.c.bf16 %v1964, %v1963
    %v1973 = vld [vmem:[%s5] sm:$0xf]
    %v1974 = vld [vmem:[%s5 + $0x4] sm:$0xf]
    %v1975 = vld [vmem:[%s5 + $0x8] sm:$0xf]
    %v1976 = vld [vmem:[%s5 + $0xc] sm:$0xf]
    %v1977 = vld [vmem:[%s5 + $0x10] sm:$0xf]
    %v1978 = vld [vmem:[%s5 + $0x14] sm:$0xf]
    %v1979 = vld [vmem:[%s5 + $0x18] sm:$0xf]
    %v1980 = vld [vmem:[%s5 + $0x1c] sm:$0xf]
    %v1981 = vld [vmem:[%s5 + $0x20] sm:$0xf]
    %v1982 = vld [vmem:[%s5 + $0x24] sm:$0xf]
    %v1983 = vld [vmem:[%s5 + $0x28] sm:$0xf]
    %v1984 = vld [vmem:[%s5 + $0x2c] sm:$0xf]
    %v1985 = vld [vmem:[%s5 + $0x30] sm:$0xf]
    %v1986 = vld [vmem:[%s5 + $0x34] sm:$0xf]
    %v1987 = vld [vmem:[%s5 + $0x38] sm:$0xf]
    %v1988 = vld [vmem:[%s5 + $0x3c] sm:$0xf]
    %v1989 = vld [vmem:[%s6] sm:$0x1]
    %v1991 = vlaneseq
    %v1992 = vshrl.u32 %v1991, 7
    %v1993 = vsub.s32 0, %v1992
    %v1994 = vrot.slane %v1989, %v1993
    %v2012 = vunpack.c.l.b16 %v1973
    %v2013 = vunpack.c.l.b16 %v1974
    %v2014 = vunpack.c.l.b16 %v1975
    %v2015 = vunpack.c.l.b16 %v1976
    %v2016 = vunpack.c.l.b16 %v1977
    %v2017 = vunpack.c.l.b16 %v1978
    %v2018 = vunpack.c.l.b16 %v1979
    %v2019 = vunpack.c.l.b16 %v1980
    %v2020 = vunpack.c.l.b16 %v1981
    %v2021 = vunpack.c.l.b16 %v1982
    %v2022 = vunpack.c.l.b16 %v1983
    %v2023 = vunpack.c.l.b16 %v1984
    %v2024 = vunpack.c.l.b16 %v1985
    %v2025 = vunpack.c.l.b16 %v1986
    %v2026 = vunpack.c.l.b16 %v1987
    %v2027 = vunpack.c.l.b16 %v1988
    %v2028 = vpack.c.b16 %v2013, %v2012
    %v2029 = vpack.c.b16 %v2015, %v2014
    %v2030 = vpack.c.b16 %v2017, %v2016
    %v2031 = vpack.c.b16 %v2019, %v2018
    %v2032 = vpack.c.b16 %v2021, %v2020
    %v2033 = vpack.c.b16 %v2023, %v2022
    %v2034 = vpack.c.b16 %v2025, %v2024
    %v2035 = vpack.c.b16 %v2027, %v2026
    %2044 = vmatprep.subr.bf16.mxu0 0
    %2045 = vmatpush1.bf16.msra.mxu0 %v2035
    %2046 = vmatprep.subr.bf16.mxu0 0
    %2047 = vmatpush1.bf16.msra.mxu0 %v2034
    %2048 = vmatprep.subr.bf16.mxu0 0
    %2049 = vmatpush1.bf16.msra.mxu0 %v2033
    %2050 = vmatprep.subr.bf16.mxu0 0
    %2051 = vmatpush1.bf16.msra.mxu0 %v2032
    %2052 = vmatprep.subr.bf16.mxu0 0
    %2053 = vmatpush1.bf16.msra.mxu0 %v2031
    %2054 = vmatprep.subr.bf16.mxu0 0
    %2055 = vmatpush1.bf16.msra.mxu0 %v2030
    %2056 = vmatprep.subr.bf16.mxu0 0
    %2057 = vmatpush1.bf16.msra.mxu0 %v2029
    %2058 = vmatprep.subr.bf16.mxu0 0
    %2059 = vmatpush1.bf16.msra.mxu0 %v2028
    %2060 = vmatprep.subr.bf16.mxu0 0
    %2061 = vmatpush2.bf16.msra.mxu0 0
    %2062 = vmatprep.subr.bf16.mxu0 0
    %2063 = vmatpush2.bf16.msra.mxu0 0
    %2064 = vmatprep.subr.bf16.mxu0 0
    %2065 = vmatpush2.bf16.msra.mxu0 0
    %2066 = vmatprep.subr.bf16.mxu0 0
    %2067 = vmatpush2.bf16.msra.mxu0 0
    %2068 = vmatprep.subr.bf16.mxu0 0
    %2069 = vmatpush2.bf16.msra.mxu0 0
    %2070 = vmatprep.subr.bf16.mxu0 0
    %2071 = vmatpush2.bf16.msra.mxu0 0
    %2072 = vmatprep.subr.bf16.mxu0 0
    %2073 = vmatpush2.bf16.msra.mxu0 0
    %2074 = vmatprep.subr.bf16.mxu0 0
    %2075 = vmatpush2.bf16.msra.mxu0 0
    %2076 = vmatprep.mubr.bf16.mxu0 0
    %2077 = vmatmul.mubr.bf16.gmra.mxu0 %v1965
    %v2078 = vpop.f32.mrf.mxu0
    %v2079 = vadd.f32 %v1994, %v2078
    %v2080 = vpop.f32.mrf.mxu0
    %v2081 = vpop.f32.mrf.mxu0
    %v2082 = vadd.f32 %v1994, %v2081
    %v2083 = vpop.f32.mrf.mxu0
    %2084 = vmatprep.mubr.bf16.mxu0 0
    %2085 = vmatmul.mubr.bf16.gmra.mxu0 %v1966
    %v2086 = vpop.f32.mrf.mxu0
    %v2087 = vadd.f32 %v1994, %v2086
    %v2088 = vpop.f32.mrf.mxu0
    %v2089 = vpop.f32.mrf.mxu0
    %v2090 = vadd.f32 %v1994, %v2089
    %v2091 = vpop.f32.mrf.mxu0
    %2092 = vmatprep.mubr.bf16.mxu0 0
    %2093 = vmatmul.mubr.bf16.gmra.mxu0 %v1967
    %v2094 = vpop.f32.mrf.mxu0
    %v2095 = vadd.f32 %v1994, %v2094
    %v2096 = vpop.f32.mrf.mxu0
    %v2097 = vpop.f32.mrf.mxu0
    %v2098 = vadd.f32 %v1994, %v2097
    %v2099 = vpop.f32.mrf.mxu0
    %2100 = vmatprep.mubr.bf16.mxu0 0
    %2101 = vmatmul.mubr.bf16.gmra.mxu0 %v1968
    %v2102 = vpop.f32.mrf.mxu0
    %v2103 = vadd.f32 %v1994, %v2102
    %v2104 = vpop.f32.mrf.mxu0
    %v2105 = vpop.f32.mrf.mxu0
    %v2106 = vadd.f32 %v1994, %v2105
    %v2107 = vpop.f32.mrf.mxu0
    %2108 = vmatprep.mubr.bf16.mxu0 0
    %2109 = vmatmul.mubr.bf16.gmra.mxu0 %v1969
    %v2110 = vpop.f32.mrf.mxu0
    %v2111 = vadd.f32 %v1994, %v2110
    %v2112 = vpop.f32.mrf.mxu0
    %v2113 = vpop.f32.mrf.mxu0
    %v2114 = vadd.f32 %v1994, %v2113
    %v2115 = vpop.f32.mrf.mxu0
    %2116 = vmatprep.mubr.bf16.mxu0 0
    %2117 = vmatmul.mubr.bf16.gmra.mxu0 %v1970
    %v2118 = vpop.f32.mrf.mxu0
    %v2119 = vadd.f32 %v1994, %v2118
    %v2120 = vpop.f32.mrf.mxu0
    %v2121 = vpop.f32.mrf.mxu0
    %v2122 = vadd.f32 %v1994, %v2121
    %v2123 = vpop.f32.mrf.mxu0
    %2124 = vmatprep.mubr.bf16.mxu0 0
    %2125 = vmatmul.mubr.bf16.gmra.mxu0 %v1971
    %v2126 = vpop.f32.mrf.mxu0
    %v2127 = vadd.f32 %v1994, %v2126
    %v2128 = vpop.f32.mrf.mxu0
    %v2129 = vpop.f32.mrf.mxu0
    %v2130 = vadd.f32 %v1994, %v2129
    %v2131 = vpop.f32.mrf.mxu0
    %2132 = vmatprep.mubr.bf16.mxu0 0
    %2133 = vmatmul.mubr.bf16.gmra.mxu0 %v1972
    %v2134 = vpop.f32.mrf.mxu0
    %v2135 = vadd.f32 %v1994, %v2134
    %v2136 = vpop.f32.mrf.mxu0
    %v2137 = vpop.f32.mrf.mxu0
    %v2138 = vadd.f32 %v1994, %v2137
    %v2139 = vpop.f32.mrf.mxu0
    %2140 = vdwg.mxu0
    %vm2141 = vcmask 80896
    %2142 = vst.msk [vmem:[#allocation7] sm:$0xff] %vm2141, %v2079
    %2143 = vst.msk [vmem:[#allocation7 + $0x8] sm:$0xff] %vm2141, %v2082
    %2144 = vst.msk [vmem:[#allocation7 + $0x10] sm:$0xff] %vm2141, %v2087
    %2145 = vst.msk [vmem:[#allocation7 + $0x18] sm:$0xff] %vm2141, %v2090
    %2146 = vst.msk [vmem:[#allocation7 + $0x20] sm:$0xff] %vm2141, %v2095
    %2147 = vst.msk [vmem:[#allocation7 + $0x28] sm:$0xff] %vm2141, %v2098
    %2148 = vst.msk [vmem:[#allocation7 + $0x30] sm:$0xff] %vm2141, %v2103
    %2149 = vst.msk [vmem:[#allocation7 + $0x38] sm:$0xff] %vm2141, %v2106
    %2150 = vst.msk [vmem:[#allocation7 + $0x40] sm:$0xff] %vm2141, %v2111
    %2151 = vst.msk [vmem:[#allocation7 + $0x48] sm:$0xff] %vm2141, %v2114
    %2152 = vst.msk [vmem:[#allocation7 + $0x50] sm:$0xff] %vm2141, %v2119
    %2153 = vst.msk [vmem:[#allocation7 + $0x58] sm:$0xff] %vm2141, %v2122
    %2154 = vst.msk [vmem:[#allocation7 + $0x60] sm:$0xff] %vm2141, %v2127
    %2155 = vst.msk [vmem:[#allocation7 + $0x68] sm:$0xff] %vm2141, %v2130
    %2156 = vst.msk [vmem:[#allocation7 + $0x70] sm:$0xff] %vm2141, %v2135
    %2157 = vst.msk [vmem:[#allocation7 + $0x78] sm:$0xff] %vm2141, %v2138
    // Predicated region
    $region38: #{tpu_custom_call.1} parent=1 // pred_check
      _
    $region39: #{tpu_custom_call.1} parent=1 // pred_check_branch
      %2159 = sbr.rel (0) target = $region41
    $region40: #{tpu_custom_call.1} parent=1 // pred_region
      %s2161 = ssub.s32 2048, 64
      %2162 = vsyncadd [#allocation4], %s2161
      %s2163 = sshll.u32 [#allocation7], 4
      %s2164 = int_to_ptr.vmem [resolvable:$true] %s2163
      %2169 = dma.vmem_to_hbm [thread:$0]  %s2164, 64, %s7, [#allocation4], 64, 64, 4
    $region41: #{tpu_custom_call.1} parent=1 // pred_fallthru
      _
    // Predicated region
    $region42: #{tpu_custom_call.1} parent=1 // pred_check
      _
    $region43: #{tpu_custom_call.1} parent=1 // pred_check_branch
      %2171 = sbr.rel (0) target = $region45
    $region44: #{tpu_custom_call.1} parent=1 // pred_region
      %2172 = dma.done [#allocation4], 2048
    $region45: #{tpu_custom_call.1} parent=1 // pred_fallthru
      _
    %2173 = vsyncpa [#allocation3], 1
    %2174 = vsyncpa [#allocation6], 1
    %2175 = vsyncpa [#allocation4], 1

</llo_original>
